<compile_context>
chip_gen: v7x
topology: tpu7x:2x2x1
jax: 0.10.0
libtpu: 0.0.40
codegen_flags: <defaults>
</compile_context>

<pallas_src>
import jax
import jax.numpy as jnp
from jax.experimental import pallas as pl
from jax.experimental.pallas import tpu as pltpu

LHID = 512       # CNNEncoder is constructed with lhid=[512, 512, 512] in DSSM
EPS = 1e-12
KMIN, KMAX = 3, 5   # conv kernel sizes 3, 4, 5


# ----------------------------- Pallas kernel -----------------------------
def dssm_kernel(x_ref, wconv_ref, bconv_ref,
                wl1_ref, bl1_ref, wl2_ref, bl2_ref, wl3_ref, bl3_ref,
                o_ref):
    N, Lpad, E = x_ref.shape            # x is zero-padded along time by KMAX-KMIN
    Lmax = Lpad - (KMAX - 1)            # = L - KMIN + 1 : #time-steps for k=3
    F3 = bconv_ref.shape[-1]            # 3 * num_filter (fused conv3|conv4|conv5)
    F = F3 // 3

    x = x_ref[...]                      # (N, Lpad, E)

    # im2col: patches[n, t, dk*E:(dk+1)*E] = x[n, t+dk, :]
    patches = jnp.concatenate(
        [x[:, dk:dk + Lmax, :] for dk in range(KMAX)], axis=-1)     # (N, Lmax, 5E)
    patches = patches.reshape(N * Lmax, KMAX * E)                   # (N*Lmax, 5E)

    # single fused conv matmul for k=3,4,5 (zero rows in wconv handle k<5)
    conv = jnp.dot(patches, wconv_ref[...],
                   preferred_element_type=jnp.float32)              # (N*Lmax, 3F)
    conv = jnp.maximum(conv + bconv_ref[...], 0.0)                  # bias + ReLU
    conv = conv.reshape(N, Lmax, F3)

    # Mask time positions that only exist for the smaller kernels:
    #   k=3 -> Lmax valid rows, k=4 -> Lmax-1, k=5 -> Lmax-2.
    # ReLU output is >= 0 and every column block has >= 1 valid row, so
    # masking invalid rows to 0 is exact for the subsequent max-pool.
    t_idx = jax.lax.broadcasted_iota(jnp.int32, (Lmax, F3), 0)
    c_idx = jax.lax.broadcasted_iota(jnp.int32, (Lmax, F3), 1)
    lk = jnp.where(c_idx < F, Lmax, jnp.where(c_idx < 2 * F, Lmax - 1, Lmax - 2))
    conv = jnp.where((t_idx < lk)[None, :, :], conv, 0.0)

    pooled = jnp.max(conv, axis=1)                                  # (N, 3F)

    # three linear layers, batched over all N rows (dropout == identity, eval)
    h = jnp.maximum(jnp.dot(pooled, wl1_ref[...],
                            preferred_element_type=jnp.float32) + bl1_ref[...], 0.0)
    h = jnp.maximum(jnp.dot(h, wl2_ref[...],
                            preferred_element_type=jnp.float32) + bl2_ref[...], 0.0)
    h = jnp.maximum(jnp.dot(h, wl3_ref[...],
                            preferred_element_type=jnp.float32) + bl3_ref[...], 0.0)

    # DSSM normalize(): row-wise L2 norm clamped at eps, via rsqrt (EUP)
    ss = jnp.sum(h * h, axis=1, keepdims=True)
    h = h * jax.lax.rsqrt(jnp.maximum(ss, EPS * EPS))

    o_ref[...] = h                                                   # one dense store


def _full_spec(shape):
    n = len(shape)
    return pl.BlockSpec(shape, lambda i, _n=n: (0,) * _n)


def dssm_encode(x_emb, params):
    """Encode a stacked embedded batch (N, L, E) -> (N, LHID) in one pallas_call."""
    N, L, E = x_emb.shape
    F = params['b3'].shape[-1]

    # pad time axis so all KMAX im2col shifts are in-bounds (padded rows are
    # either multiplied by the zero rows of the weight slab or masked out)
    x_pad = jnp.pad(x_emb, ((0, 0), (0, KMAX - KMIN), (0, 0)))      # (N, L+2, E)

    # fused zero-padded conv weight slab: (5E, 3F), column blocks [k3 | k4 | k5]
    w_conv = jnp.zeros((KMAX * E, 3 * F), jnp.float32)
    w_conv = w_conv.at[:3 * E, 0:F].set(params['w3'])
    w_conv = w_conv.at[:4 * E, F:2 * F].set(params['w4'])
    w_conv = w_conv.at[:, 2 * F:].set(params['w5'])
    b_conv = jnp.concatenate([params['b3'], params['b4'], params['b5']], axis=1)

    arrays = [x_pad, w_conv, b_conv,
              params['wl1'], params['bl1'],
              params['wl2'], params['bl2'],
              params['wl3'], params['bl3']]
    return pl.pallas_call(
        dssm_kernel,
        out_shape=jax.ShapeDtypeStruct((N, LHID), jnp.float32),
        grid=(1,),
        in_specs=[_full_spec(a.shape) for a in arrays],
        out_specs=pl.BlockSpec((N, LHID), lambda i: (0, 0)),
        compiler_params=pltpu.CompilerParams(
            dimension_semantics=("arbitrary",)),
    )(*arrays)


# --------------------------- pure-JAX reference ---------------------------
def cnn_encode_ref(x_emb, params):
    B, L, E = x_emb.shape
    hi = jax.lax.Precision.HIGHEST
    pooled = []
    for k, wn, bn in ((3, 'w3', 'b3'), (4, 'w4', 'b4'), (5, 'w5', 'b5')):
        w, b = params[wn], params[bn]
        Lk = L - k + 1
        acc = jnp.zeros((B, Lk, w.shape[-1]), jnp.float32)
        for dk in range(k):
            acc = acc + jnp.einsum('ble,ef->blf', x_emb[:, dk:dk + Lk, :],
                                   w[dk * E:(dk + 1) * E, :], precision=hi)
        acc = jax.nn.relu(acc + b[None, :, :])
        pooled.append(jnp.max(acc, axis=1))
    h = jnp.concatenate(pooled, axis=1)
    for wn, bn in (('wl1', 'bl1'), ('wl2', 'bl2'), ('wl3', 'bl3')):
        h = jax.nn.relu(jnp.dot(h, params[wn], precision=hi) + params[bn])
    nrm = jnp.maximum(jnp.linalg.norm(h, axis=1, keepdims=True), EPS)
    return h / nrm


# ----------------------------- parameter init -----------------------------
def init_params(key, nemb, num_filter):
    E, F = nemb, num_filter

    def unif(k, shape, fan_in):
        bound = 1.0 / float(fan_in) ** 0.5
        return jax.random.uniform(k, shape, jnp.float32, -bound, bound)

    ks = jax.random.split(key, 12)
    p = {}
    # Conv2d(1, F, (k, E)) -> stored as (k*E, F) (i.e. weight.reshape(F, k*E).T)
    p['w3'] = unif(ks[0], (3 * E, F), 3 * E); p['b3'] = unif(ks[1], (1, F), 3 * E)
    p['w4'] = unif(ks[2], (4 * E, F), 4 * E); p['b4'] = unif(ks[3], (1, F), 4 * E)
    p['w5'] = unif(ks[4], (5 * E, F), 5 * E); p['b5'] = unif(ks[5], (1, F), 5 * E)
    # Linear(in, out) -> stored as (in, out) (= weight.T)
    p['wl1'] = unif(ks[6], (3 * F, LHID), 3 * F); p['bl1'] = unif(ks[7], (1, LHID), 3 * F)
    p['wl2'] = unif(ks[8], (LHID, LHID), LHID);   p['bl2'] = unif(ks[9], (1, LHID), LHID)
    p['wl3'] = unif(ks[10], (LHID, LHID), LHID);  p['bl3'] = unif(ks[11], (1, LHID), LHID)
    return p


# --------------------------------- main -----------------------------------
if __name__ == "__main__":
    key = jax.random.PRNGKey(0)
    k_emb, k_par, k_d1, k_d2, k_d3 = jax.random.split(key, 5)

    ntokens, nemb, sent_len, batch, num_filter = 50, 32, 12, 2, 8

    embed_table = jax.random.normal(k_emb, (ntokens, nemb), jnp.float32)
    params = init_params(k_par, nemb, num_filter)

    # DSSM input: (post, cmnt, neg) token-id sequences
    data = tuple(jax.random.randint(k, (batch, sent_len), 0, ntokens, jnp.int32)
                 for k in (k_d1, k_d2, k_d3))

    # DSSM.forward: embed (gather, JAX glue) -> one fused encode over all 3B rows
    embeds = [jnp.take(embed_table, d, axis=0) for d in data]       # 3 x (B, L, E)
    x_all = jnp.concatenate(embeds, axis=0)                         # (3B, L, E)
    out_all = jax.block_until_ready(dssm_encode(x_all, params))     # (3B, 512)
    outs = [out_all[i * batch:(i + 1) * batch] for i in range(3)]   # post, cmnt, neg

    refs = [cnn_encode_ref(e, params) for e in embeds]
    for o, r in zip(outs, refs):
        assert o.shape == (batch, LHID)
        assert jnp.allclose(o, r, atol=2e-3, rtol=2e-3)

    print("KERNEL_OK")
</pallas_src>

<mosaic_0001>
module attributes {stable_mosaic.version = 11 : i64} {
  func.func @dssm_kernel(%arg0: i32, %arg1: memref<6x14x32xf32, #tpu.memory_space<vmem>>, %arg2: memref<160x24xf32, #tpu.memory_space<vmem>>, %arg3: memref<1x24xf32, #tpu.memory_space<vmem>>, %arg4: memref<24x512xf32, #tpu.memory_space<vmem>>, %arg5: memref<1x512xf32, #tpu.memory_space<vmem>>, %arg6: memref<512x512xf32, #tpu.memory_space<vmem>>, %arg7: memref<1x512xf32, #tpu.memory_space<vmem>>, %arg8: memref<512x512xf32, #tpu.memory_space<vmem>>, %arg9: memref<1x512xf32, #tpu.memory_space<vmem>>, %arg10: memref<6x512xf32, #tpu.memory_space<vmem>>) attributes {dimension_semantics = [#tpu.dimension_semantics<arbitrary>], iteration_bounds = array<i64: 1>, scalar_prefetch = 0 : i64, scratch_operands = 0 : i64, tpu.core_type = #tpu.core_type<tc>, window_params = [{pipeline_mode = #tpu.pipeline_mode<synchronous>, transform_indices = @transform_0, window_bounds = array<i64: 6, 14, 32>}, {pipeline_mode = #tpu.pipeline_mode<synchronous>, transform_indices = @transform_1, window_bounds = array<i64: 160, 24>}, {pipeline_mode = #tpu.pipeline_mode<synchronous>, transform_indices = @transform_2, window_bounds = array<i64: 1, 24>}, {pipeline_mode = #tpu.pipeline_mode<synchronous>, transform_indices = @transform_3, window_bounds = array<i64: 24, 512>}, {pipeline_mode = #tpu.pipeline_mode<synchronous>, transform_indices = @transform_4, window_bounds = array<i64: 1, 512>}, {pipeline_mode = #tpu.pipeline_mode<synchronous>, transform_indices = @transform_5, window_bounds = array<i64: 512, 512>}, {pipeline_mode = #tpu.pipeline_mode<synchronous>, transform_indices = @transform_6, window_bounds = array<i64: 1, 512>}, {pipeline_mode = #tpu.pipeline_mode<synchronous>, transform_indices = @transform_7, window_bounds = array<i64: 512, 512>}, {pipeline_mode = #tpu.pipeline_mode<synchronous>, transform_indices = @transform_8, window_bounds = array<i64: 1, 512>}, {pipeline_mode = #tpu.pipeline_mode<synchronous>, transform_indices = @transform_9, window_bounds = array<i64: 6, 512>}]} {
    %c0 = arith.constant 0 : index
    %c0_0 = arith.constant 0 : index
    %c0_1 = arith.constant 0 : index
    %0 = vector.load %arg1[%c0, %c0_0, %c0_1] : memref<6x14x32xf32, #tpu.memory_space<vmem>>, vector<6x14x32xf32>
    %1 = vector.extract_strided_slice %0 {offsets = [0, 0, 0], sizes = [6, 10, 32], strides = [1, 1, 1]} : vector<6x14x32xf32> to vector<6x10x32xf32>
    %2 = vector.extract_strided_slice %0 {offsets = [0, 1, 0], sizes = [6, 10, 32], strides = [1, 1, 1]} : vector<6x14x32xf32> to vector<6x10x32xf32>
    %3 = vector.extract_strided_slice %0 {offsets = [0, 2, 0], sizes = [6, 10, 32], strides = [1, 1, 1]} : vector<6x14x32xf32> to vector<6x10x32xf32>
    %4 = vector.extract_strided_slice %0 {offsets = [0, 3, 0], sizes = [6, 10, 32], strides = [1, 1, 1]} : vector<6x14x32xf32> to vector<6x10x32xf32>
    %5 = vector.extract_strided_slice %0 {offsets = [0, 4, 0], sizes = [6, 10, 32], strides = [1, 1, 1]} : vector<6x14x32xf32> to vector<6x10x32xf32>
    %6 = tpu.concatenate %1, %2, %3, %4, %5 in 2 : vector<6x10x32xf32>, vector<6x10x32xf32>, vector<6x10x32xf32>, vector<6x10x32xf32>, vector<6x10x32xf32> -> vector<6x10x160xf32>
    %7 = vector.shape_cast %6 : vector<6x10x160xf32> to vector<60x160xf32>
    %c0_2 = arith.constant 0 : index
    %c0_3 = arith.constant 0 : index
    %8 = vector.load %arg2[%c0_2, %c0_3] : memref<160x24xf32, #tpu.memory_space<vmem>>, vector<160x24xf32>
    %cst = arith.constant dense<0.000000e+00> : vector<60x24xf32>
    %9 = tpu.matmul %7, %8, %cst {dimension_numbers = #tpu.dot_dimension_numbers<[1], [0], [0], [1], [0, 0, 1, 1], [], []>} : vector<60x160xf32>, vector<160x24xf32>, vector<60x24xf32> -> vector<60x24xf32>
    %c0_4 = arith.constant 0 : index
    %c0_5 = arith.constant 0 : index
    %10 = vector.load %arg3[%c0_4, %c0_5] : memref<1x24xf32, #tpu.memory_space<vmem>>, vector<1x24xf32>
    %11 = vector.broadcast %10 : vector<1x24xf32> to vector<60x24xf32>
    %12 = arith.addf %9, %11 : vector<60x24xf32>
    %cst_6 = arith.constant 0.000000e+00 : f32
    %13 = vector.broadcast %cst_6 : f32 to vector<60x24xf32>
    %14 = arith.maximumf %12, %13 : vector<60x24xf32>
    %15 = vector.shape_cast %14 : vector<60x24xf32> to vector<6x10x24xf32>
    %16 = tpu.iota {dimensions = array<i32: 0>} : vector<10x24xi32>
    %17 = tpu.iota {dimensions = array<i32: 1>} : vector<10x24xi32>
    %c8_i32 = arith.constant 8 : i32
    %18 = vector.broadcast %c8_i32 : i32 to vector<10x24xi32>
    %19 = arith.cmpi slt, %17, %18 : vector<10x24xi32>
    %c16_i32 = arith.constant 16 : i32
    %20 = vector.broadcast %c16_i32 : i32 to vector<10x24xi32>
    %21 = arith.cmpi slt, %17, %20 : vector<10x24xi32>
    %c9_i32 = arith.constant 9 : i32
    %c8_i32_7 = arith.constant 8 : i32
    %22 = vector.broadcast %c9_i32 : i32 to vector<10x24xi32>
    %23 = vector.broadcast %c8_i32_7 : i32 to vector<10x24xi32>
    %24 = arith.select %21, %22, %23 : vector<10x24xi1>, vector<10x24xi32>
    %c10_i32 = arith.constant 10 : i32
    %25 = vector.broadcast %c10_i32 : i32 to vector<10x24xi32>
    %26 = arith.select %19, %25, %24 : vector<10x24xi1>, vector<10x24xi32>
    %27 = arith.cmpi slt, %16, %26 : vector<10x24xi32>
    %28 = vector.shape_cast %27 : vector<10x24xi1> to vector<1x10x24xi1>
    %cst_8 = arith.constant 0.000000e+00 : f32
    %29 = vector.shape_cast %28 : vector<1x10x24xi1> to vector<1x10x24xi1>
    %30 = vector.broadcast %29 : vector<1x10x24xi1> to vector<6x10x24xi1>
    %31 = vector.broadcast %cst_8 : f32 to vector<6x10x24xf32>
    %32 = arith.select %30, %15, %31 : vector<6x10x24xi1>, vector<6x10x24xf32>
    %cst_9 = arith.constant dense<0xFF800000> : vector<6x24xf32>
    %33 = vector.multi_reduction <maximumf>, %32, %cst_9 [1] : vector<6x10x24xf32> to vector<6x24xf32>
    %c0_10 = arith.constant 0 : index
    %c0_11 = arith.constant 0 : index
    %34 = vector.load %arg4[%c0_10, %c0_11] : memref<24x512xf32, #tpu.memory_space<vmem>>, vector<24x512xf32>
    %cst_12 = arith.constant dense<0.000000e+00> : vector<6x512xf32>
    %35 = tpu.matmul %33, %34, %cst_12 {dimension_numbers = #tpu.dot_dimension_numbers<[1], [0], [0], [1], [0, 0, 1, 1], [], []>} : vector<6x24xf32>, vector<24x512xf32>, vector<6x512xf32> -> vector<6x512xf32>
    %c0_13 = arith.constant 0 : index
    %c0_14 = arith.constant 0 : index
    %36 = vector.load %arg5[%c0_13, %c0_14] : memref<1x512xf32, #tpu.memory_space<vmem>>, vector<1x512xf32>
    %37 = vector.broadcast %36 : vector<1x512xf32> to vector<6x512xf32>
    %38 = arith.addf %35, %37 : vector<6x512xf32>
    %cst_15 = arith.constant 0.000000e+00 : f32
    %39 = vector.broadcast %cst_15 : f32 to vector<6x512xf32>
    %40 = arith.maximumf %38, %39 : vector<6x512xf32>
    %c0_16 = arith.constant 0 : index
    %c0_17 = arith.constant 0 : index
    %41 = vector.load %arg6[%c0_16, %c0_17] : memref<512x512xf32, #tpu.memory_space<vmem>>, vector<512x512xf32>
    %cst_18 = arith.constant dense<0.000000e+00> : vector<6x512xf32>
    %42 = tpu.matmul %40, %41, %cst_18 {dimension_numbers = #tpu.dot_dimension_numbers<[1], [0], [0], [1], [0, 0, 1, 1], [], []>} : vector<6x512xf32>, vector<512x512xf32>, vector<6x512xf32> -> vector<6x512xf32>
    %c0_19 = arith.constant 0 : index
    %c0_20 = arith.constant 0 : index
    %43 = vector.load %arg7[%c0_19, %c0_20] : memref<1x512xf32, #tpu.memory_space<vmem>>, vector<1x512xf32>
    %44 = vector.broadcast %43 : vector<1x512xf32> to vector<6x512xf32>
    %45 = arith.addf %42, %44 : vector<6x512xf32>
    %cst_21 = arith.constant 0.000000e+00 : f32
    %46 = vector.broadcast %cst_21 : f32 to vector<6x512xf32>
    %47 = arith.maximumf %45, %46 : vector<6x512xf32>
    %c0_22 = arith.constant 0 : index
    %c0_23 = arith.constant 0 : index
    %48 = vector.load %arg8[%c0_22, %c0_23] : memref<512x512xf32, #tpu.memory_space<vmem>>, vector<512x512xf32>
    %cst_24 = arith.constant dense<0.000000e+00> : vector<6x512xf32>
    %49 = tpu.matmul %47, %48, %cst_24 {dimension_numbers = #tpu.dot_dimension_numbers<[1], [0], [0], [1], [0, 0, 1, 1], [], []>} : vector<6x512xf32>, vector<512x512xf32>, vector<6x512xf32> -> vector<6x512xf32>
    %c0_25 = arith.constant 0 : index
    %c0_26 = arith.constant 0 : index
    %50 = vector.load %arg9[%c0_25, %c0_26] : memref<1x512xf32, #tpu.memory_space<vmem>>, vector<1x512xf32>
    %51 = vector.broadcast %50 : vector<1x512xf32> to vector<6x512xf32>
    %52 = arith.addf %49, %51 : vector<6x512xf32>
    %cst_27 = arith.constant 0.000000e+00 : f32
    %53 = vector.broadcast %cst_27 : f32 to vector<6x512xf32>
    %54 = arith.maximumf %52, %53 : vector<6x512xf32>
    %55 = arith.mulf %54, %54 : vector<6x512xf32>
    %cst_28 = arith.constant dense<0.000000e+00> : vector<6xf32>
    %56 = vector.multi_reduction <add>, %55, %cst_28 [1] : vector<6x512xf32> to vector<6xf32>
    %57 = vector.shape_cast %56 : vector<6xf32> to vector<6x1xf32>
    %cst_29 = arith.constant 1.000000e-24 : f32
    %58 = vector.broadcast %cst_29 : f32 to vector<6x1xf32>
    %59 = arith.maximumf %57, %58 : vector<6x1xf32>
    %60 = math.rsqrt %59 : vector<6x1xf32>
    %61 = vector.broadcast %60 : vector<6x1xf32> to vector<6x512xf32>
    %62 = arith.mulf %54, %61 : vector<6x512xf32>
    %c0_30 = arith.constant 0 : index
    %c0_31 = arith.constant 0 : index
    %63 = vector.load %arg10[%c0_30, %c0_31] : memref<6x512xf32, #tpu.memory_space<vmem>>, vector<6x512xf32>
    tpu.vector_store %arg10[%c0_30, %c0_31], %62 {strides = array<i32>} : memref<6x512xf32, #tpu.memory_space<vmem>>, vector<6x512xf32>,
    return
  }
  func.func @transform_0(%arg0: i32) -> (i32, i32, i32) {
    %c0_i32 = arith.constant 0 : i32
    %c0_i32_0 = arith.constant 0 : i32
    %c0_i32_1 = arith.constant 0 : i32
    %c0_i32_2 = arith.constant 0 : i32
    return %c0_i32, %c0_i32_0, %c0_i32_1 : i32, i32, i32
  }
  func.func @transform_1(%arg0: i32) -> (i32, i32) {
    %c0_i32 = arith.constant 0 : i32
    %c0_i32_0 = arith.constant 0 : i32
    %c0_i32_1 = arith.constant 0 : i32
    return %c0_i32, %c0_i32_0 : i32, i32
  }
  func.func @transform_2(%arg0: i32) -> (i32, i32) {
    %c0_i32 = arith.constant 0 : i32
    %c0_i32_0 = arith.constant 0 : i32
    %c0_i32_1 = arith.constant 0 : i32
    return %c0_i32, %c0_i32_0 : i32, i32
  }
  func.func @transform_3(%arg0: i32) -> (i32, i32) {
    %c0_i32 = arith.constant 0 : i32
    %c0_i32_0 = arith.constant 0 : i32
    %c0_i32_1 = arith.constant 0 : i32
    return %c0_i32, %c0_i32_0 : i32, i32
  }
  func.func @transform_4(%arg0: i32) -> (i32, i32) {
    %c0_i32 = arith.constant 0 : i32
    %c0_i32_0 = arith.constant 0 : i32
    %c0_i32_1 = arith.constant 0 : i32
    return %c0_i32, %c0_i32_0 : i32, i32
  }
  func.func @transform_5(%arg0: i32) -> (i32, i32) {
    %c0_i32 = arith.constant 0 : i32
    %c0_i32_0 = arith.constant 0 : i32
    %c0_i32_1 = arith.constant 0 : i32
    return %c0_i32, %c0_i32_0 : i32, i32
  }
  func.func @transform_6(%arg0: i32) -> (i32, i32) {
    %c0_i32 = arith.constant 0 : i32
    %c0_i32_0 = arith.constant 0 : i32
    %c0_i32_1 = arith.constant 0 : i32
    return %c0_i32, %c0_i32_0 : i32, i32
  }
  func.func @transform_7(%arg0: i32) -> (i32, i32) {
    %c0_i32 = arith.constant 0 : i32
    %c0_i32_0 = arith.constant 0 : i32
    %c0_i32_1 = arith.constant 0 : i32
    return %c0_i32, %c0_i32_0 : i32, i32
  }
  func.func @transform_8(%arg0: i32) -> (i32, i32) {
    %c0_i32 = arith.constant 0 : i32
    %c0_i32_0 = arith.constant 0 : i32
    %c0_i32_1 = arith.constant 0 : i32
    return %c0_i32, %c0_i32_0 : i32, i32
  }
  func.func @transform_9(%arg0: i32) -> (i32, i32) {
    %c0_i32 = arith.constant 0 : i32
    %c0_i32_0 = arith.constant 0 : i32
    %c0_i32_1 = arith.constant 0 : i32
    return %c0_i32, %c0_i32_0 : i32, i32
  }
}

</mosaic_0001>

<llo_original>
// kernel: tpu_custom_call.1
$region0: #{tpu_custom_call.1}
  #allocation0 [shape = 'u32[]', space=smem, size = 0x4, offset = 0x4, fixed_abs, tag = 'smem constant byte address 0x4 - core index']
  #allocation1 [shape = 'u32[144,128]{1,0:T(1,128)}', space=vmem, size = 0x12000, scoped, tag = 'internal scratch']
  %s0 = inlined_call_operand.vmem [shape: f32[6,14,32], index: 0, kind: input, shape index: {}]
  %s1 = inlined_call_operand.vmem [shape: f32[160,24], index: 1, kind: input, shape index: {}]
  %s2 = inlined_call_operand.vmem [shape: f32[1,24], index: 2, kind: input, shape index: {}]
  %s3 = inlined_call_operand.vmem [shape: f32[24,512], index: 3, kind: input, shape index: {}]
  %s4 = inlined_call_operand.vmem [shape: f32[1,512], index: 4, kind: input, shape index: {}]
  %s5 = inlined_call_operand.hbm [shape: f32[512,512], index: 5, kind: input, shape index: {}]
  %s6 = inlined_call_operand.vmem [shape: f32[1,512], index: 6, kind: input, shape index: {}]
  %s7 = inlined_call_operand.hbm [shape: f32[512,512], index: 7, kind: input, shape index: {}]
  %s8 = inlined_call_operand.vmem [shape: f32[1,512], index: 8, kind: input, shape index: {}]
  %s9 = inlined_call_operand.hbm [shape: f32[6,512], index: 9, kind: output, shape index: {}]
  %s10 = sld [smem:[#allocation0]]
  $region54: #{tpu_custom_call.1} parent=0
    _
  %s12 = ssub.s32 1, %s10
  %s13 = scalar_select 0, %s12, %s10
  $region1: #{tpu_custom_call.1} parent=0
    #allocation2 [shape = 'u8[1048576]{0}', space=vmem, size = 0x100000, scoped, tag = 'input window, operand 5, single buffered']
    #allocation3 [shape = 's32[1]{0}', space=sflag, size = 0x4, scoped, tag = 'scoped memory for tpu_custom_call.1']
    #allocation4 [shape = 's32[1]{0}', space=sflag, size = 0x4, scoped, tag = 'scoped memory for tpu_custom_call.1']
    #allocation5 [shape = 'u8[1048576]{0}', space=vmem, size = 0x100000, scoped, tag = 'input window, operand 7, single buffered']
    #allocation6 [shape = 's32[1]{0}', space=sflag, size = 0x4, scoped, tag = 'scoped memory for tpu_custom_call.1']
    #allocation7 [shape = 'u8[16384]{0}', space=vmem, size = 0x4000, scoped, tag = 'output window, operand 0, single buffered']
    %14 = vsyncpa [#allocation3], 0
    %15 = vsyncpa [#allocation6], 0
    %16 = vsyncpa [#allocation4], 0
    // Predicated region
    $region2: #{tpu_custom_call.1} parent=1 // pred_check
      _
    $region3: #{tpu_custom_call.1} parent=1 // pred_check_branch
      %18 = sbr.rel (0) target = $region5
    $region4: #{tpu_custom_call.1} parent=1 // pred_region
      _
    $region5: #{tpu_custom_call.1} parent=1 // pred_fallthru
      _
    // Predicated region
    $region6: #{tpu_custom_call.1} parent=1 // pred_check
      _
    $region7: #{tpu_custom_call.1} parent=1 // pred_check_branch
      %20 = sbr.rel (0) target = $region9
    $region8: #{tpu_custom_call.1} parent=1 // pred_region
      _
    $region9: #{tpu_custom_call.1} parent=1 // pred_fallthru
      _
    // Predicated region
    $region10: #{tpu_custom_call.1} parent=1 // pred_check
      _
    $region11: #{tpu_custom_call.1} parent=1 // pred_check_branch
      %22 = sbr.rel (0) target = $region13
    $region12: #{tpu_custom_call.1} parent=1 // pred_region
      _
    $region13: #{tpu_custom_call.1} parent=1 // pred_fallthru
      _
    // Predicated region
    $region14: #{tpu_custom_call.1} parent=1 // pred_check
      _
    $region15: #{tpu_custom_call.1} parent=1 // pred_check_branch
      %24 = sbr.rel (0) target = $region17
    $region16: #{tpu_custom_call.1} parent=1 // pred_region
      _
    $region17: #{tpu_custom_call.1} parent=1 // pred_fallthru
      _
    // Predicated region
    $region18: #{tpu_custom_call.1} parent=1 // pred_check
      _
    $region19: #{tpu_custom_call.1} parent=1 // pred_check_branch
      %26 = sbr.rel (0) target = $region21
    $region20: #{tpu_custom_call.1} parent=1 // pred_region
      _
    $region21: #{tpu_custom_call.1} parent=1 // pred_fallthru
      _
    // Predicated region
    $region22: #{tpu_custom_call.1} parent=1 // pred_check
      _
    $region23: #{tpu_custom_call.1} parent=1 // pred_check_branch
      %28 = sbr.rel (0) target = $region25
    $region24: #{tpu_custom_call.1} parent=1 // pred_region
      %s30 = ssub.s32 32768, 32768
      %31 = vsyncadd [#allocation3], %s30
      %s32 = sshll.u32 [#allocation2], 4
      %s33 = int_to_ptr.vmem [resolvable:$true] %s32
      %38 = dma.hbm_to_vmem [thread:$0]  %s5, 32768, %s33, [#allocation3], 512, 512, 32
    $region25: #{tpu_custom_call.1} parent=1 // pred_fallthru
      _
    // Predicated region
    $region26: #{tpu_custom_call.1} parent=1 // pred_check
      _
    $region27: #{tpu_custom_call.1} parent=1 // pred_check_branch
      %40 = sbr.rel (0) target = $region29
    $region28: #{tpu_custom_call.1} parent=1 // pred_region
      _
    $region29: #{tpu_custom_call.1} parent=1 // pred_fallthru
      _
    // Predicated region
    $region30: #{tpu_custom_call.1} parent=1 // pred_check
      _
    $region31: #{tpu_custom_call.1} parent=1 // pred_check_branch
      %42 = sbr.rel (0) target = $region33
    $region32: #{tpu_custom_call.1} parent=1 // pred_region
      %s44 = ssub.s32 32768, 32768
      %45 = vsyncadd [#allocation6], %s44
      %s46 = sshll.u32 [#allocation5], 4
      %s47 = int_to_ptr.vmem [resolvable:$true] %s46
      %52 = dma.hbm_to_vmem [thread:$0]  %s7, 32768, %s47, [#allocation6], 512, 512, 32
    $region33: #{tpu_custom_call.1} parent=1 // pred_fallthru
      _
    // Predicated region
    $region34: #{tpu_custom_call.1} parent=1 // pred_check
      _
    $region35: #{tpu_custom_call.1} parent=1 // pred_check_branch
      %54 = sbr.rel (0) target = $region37
    $region36: #{tpu_custom_call.1} parent=1 // pred_region
      _
    $region37: #{tpu_custom_call.1} parent=1 // pred_fallthru
      _
    // Predicated region
    $region38: #{tpu_custom_call.1} parent=1 // pred_check
      _
    $region39: #{tpu_custom_call.1} parent=1 // pred_check_branch
      %56 = sbr.rel (0) target = $region41
    $region40: #{tpu_custom_call.1} parent=1 // pred_region
      %57 = dma.done [#allocation3], 32768
    $region41: #{tpu_custom_call.1} parent=1 // pred_fallthru
      _
    // Predicated region
    $region42: #{tpu_custom_call.1} parent=1 // pred_check
      _
    $region43: #{tpu_custom_call.1} parent=1 // pred_check_branch
      %59 = sbr.rel (0) target = $region45
    $region44: #{tpu_custom_call.1} parent=1 // pred_region
      %60 = dma.done [#allocation6], 32768
    $region45: #{tpu_custom_call.1} parent=1 // pred_fallthru
      _
    %v61 = vld [vmem:[%s0] sm:$0xff]
    %v62 = vld [vmem:[%s0 + $0x8] sm:$0x3f]
    %v63 = vld [vmem:[%s0 + $0x10] sm:$0xff]
    %v64 = vld [vmem:[%s0 + $0x18] sm:$0x3f]
    %v65 = vld [vmem:[%s0 + $0x20] sm:$0xff]
    %v66 = vld [vmem:[%s0 + $0x28] sm:$0x3f]
    %v67 = vld [vmem:[%s0 + $0x30] sm:$0xff]
    %v68 = vld [vmem:[%s0 + $0x38] sm:$0x3f]
    %v69 = vld [vmem:[%s0 + $0x40] sm:$0xff]
    %v70 = vld [vmem:[%s0 + $0x48] sm:$0x3f]
    %v71 = vld [vmem:[%s0 + $0x50] sm:$0xff]
    %v72 = vld [vmem:[%s0 + $0x58] sm:$0x3f]
    %vm85 = vcmask 1046528
    %v86 = vrot.slane %v61, 1
    %v87 = vrot.slane %v62, 1
    %v88 = vsel %vm85, %v86, %v87
    %v89 = vrot.slane %v63, 1
    %v90 = vrot.slane %v64, 1
    %v91 = vsel %vm85, %v89, %v90
    %v92 = vrot.slane %v65, 1
    %v93 = vrot.slane %v66, 1
    %v94 = vsel %vm85, %v92, %v93
    %v95 = vrot.slane %v67, 1
    %v96 = vrot.slane %v68, 1
    %v97 = vsel %vm85, %v95, %v96
    %v98 = vrot.slane %v69, 1
    %v99 = vrot.slane %v70, 1
    %v100 = vsel %vm85, %v98, %v99
    %v101 = vrot.slane %v71, 1
    %v102 = vrot.slane %v72, 1
    %v103 = vsel %vm85, %v101, %v102
    %104 = vrot.lane.b32.xlu0 %v88, 32
    %v105 = vpop.permute.xlu0 %104
    %106 = vrot.lane.b32.xlu0 %v87, 32
    %v107 = vpop.permute.xlu0 %106
    %108 = vrot.lane.b32.xlu0 %v91, 32
    %v109 = vpop.permute.xlu0 %108
    %110 = vrot.lane.b32.xlu0 %v90, 32
    %v111 = vpop.permute.xlu0 %110
    %112 = vrot.lane.b32.xlu0 %v94, 32
    %v113 = vpop.permute.xlu0 %112
    %114 = vrot.lane.b32.xlu0 %v93, 32
    %v115 = vpop.permute.xlu0 %114
    %116 = vrot.lane.b32.xlu0 %v97, 32
    %v117 = vpop.permute.xlu0 %116
    %118 = vrot.lane.b32.xlu0 %v96, 32
    %v119 = vpop.permute.xlu0 %118
    %120 = vrot.lane.b32.xlu0 %v100, 32
    %v121 = vpop.permute.xlu0 %120
    %122 = vrot.lane.b32.xlu0 %v99, 32
    %v123 = vpop.permute.xlu0 %122
    %124 = vrot.lane.b32.xlu0 %v103, 32
    %v125 = vpop.permute.xlu0 %124
    %126 = vrot.lane.b32.xlu0 %v102, 32
    %v127 = vpop.permute.xlu0 %126
    %vm140 = vcmask 1045504
    %v141 = vrot.slane %v61, 2
    %v142 = vrot.slane %v62, 2
    %v143 = vsel %vm140, %v141, %v142
    %v144 = vrot.slane %v63, 2
    %v145 = vrot.slane %v64, 2
    %v146 = vsel %vm140, %v144, %v145
    %v147 = vrot.slane %v65, 2
    %v148 = vrot.slane %v66, 2
    %v149 = vsel %vm140, %v147, %v148
    %v150 = vrot.slane %v67, 2
    %v151 = vrot.slane %v68, 2
    %v152 = vsel %vm140, %v150, %v151
    %v153 = vrot.slane %v69, 2
    %v154 = vrot.slane %v70, 2
    %v155 = vsel %vm140, %v153, %v154
    %v156 = vrot.slane %v71, 2
    %v157 = vrot.slane %v72, 2
    %v158 = vsel %vm140, %v156, %v157
    %159 = vrot.lane.b32.xlu0 %v143, 64
    %v160 = vpop.permute.xlu0 %159
    %161 = vrot.lane.b32.xlu0 %v142, 64
    %v162 = vpop.permute.xlu0 %161
    %163 = vrot.lane.b32.xlu0 %v146, 64
    %v164 = vpop.permute.xlu0 %163
    %165 = vrot.lane.b32.xlu0 %v145, 64
    %v166 = vpop.permute.xlu0 %165
    %167 = vrot.lane.b32.xlu0 %v149, 64
    %v168 = vpop.permute.xlu0 %167
    %169 = vrot.lane.b32.xlu0 %v148, 64
    %v170 = vpop.permute.xlu0 %169
    %171 = vrot.lane.b32.xlu0 %v152, 64
    %v172 = vpop.permute.xlu0 %171
    %173 = vrot.lane.b32.xlu0 %v151, 64
    %v174 = vpop.permute.xlu0 %173
    %175 = vrot.lane.b32.xlu0 %v155, 64
    %v176 = vpop.permute.xlu0 %175
    %177 = vrot.lane.b32.xlu0 %v154, 64
    %v178 = vpop.permute.xlu0 %177
    %179 = vrot.lane.b32.xlu0 %v158, 64
    %v180 = vpop.permute.xlu0 %179
    %181 = vrot.lane.b32.xlu0 %v157, 64
    %v182 = vpop.permute.xlu0 %181
    %vm195 = vcmask 1044480
    %v196 = vrot.slane %v61, 3
    %v197 = vrot.slane %v62, 3
    %v198 = vsel %vm195, %v196, %v197
    %v199 = vrot.slane %v63, 3
    %v200 = vrot.slane %v64, 3
    %v201 = vsel %vm195, %v199, %v200
    %v202 = vrot.slane %v65, 3
    %v203 = vrot.slane %v66, 3
    %v204 = vsel %vm195, %v202, %v203
    %v205 = vrot.slane %v67, 3
    %v206 = vrot.slane %v68, 3
    %v207 = vsel %vm195, %v205, %v206
    %v208 = vrot.slane %v69, 3
    %v209 = vrot.slane %v70, 3
    %v210 = vsel %vm195, %v208, %v209
    %v211 = vrot.slane %v71, 3
    %v212 = vrot.slane %v72, 3
    %v213 = vsel %vm195, %v211, %v212
    %214 = vrot.lane.b32.xlu0 %v198, 96
    %v215 = vpop.permute.xlu0 %214
    %216 = vrot.lane.b32.xlu0 %v197, 96
    %v217 = vpop.permute.xlu0 %216
    %218 = vrot.lane.b32.xlu0 %v201, 96
    %v219 = vpop.permute.xlu0 %218
    %220 = vrot.lane.b32.xlu0 %v200, 96
    %v221 = vpop.permute.xlu0 %220
    %222 = vrot.lane.b32.xlu0 %v204, 96
    %v223 = vpop.permute.xlu0 %222
    %224 = vrot.lane.b32.xlu0 %v203, 96
    %v225 = vpop.permute.xlu0 %224
    %226 = vrot.lane.b32.xlu0 %v207, 96
    %v227 = vpop.permute.xlu0 %226
    %228 = vrot.lane.b32.xlu0 %v206, 96
    %v229 = vpop.permute.xlu0 %228
    %230 = vrot.lane.b32.xlu0 %v210, 96
    %v231 = vpop.permute.xlu0 %230
    %232 = vrot.lane.b32.xlu0 %v209, 96
    %v233 = vpop.permute.xlu0 %232
    %234 = vrot.lane.b32.xlu0 %v213, 96
    %v235 = vpop.permute.xlu0 %234
    %236 = vrot.lane.b32.xlu0 %v212, 96
    %v237 = vpop.permute.xlu0 %236
    %vm250 = vcmask 1043456
    %v251 = vrot.slane %v61, 4
    %v252 = vrot.slane %v62, 4
    %v253 = vsel %vm250, %v251, %v252
    %v254 = vrot.slane %v63, 4
    %v255 = vrot.slane %v64, 4
    %v256 = vsel %vm250, %v254, %v255
    %v257 = vrot.slane %v65, 4
    %v258 = vrot.slane %v66, 4
    %v259 = vsel %vm250, %v257, %v258
    %v260 = vrot.slane %v67, 4
    %v261 = vrot.slane %v68, 4
    %v262 = vsel %vm250, %v260, %v261
    %v263 = vrot.slane %v69, 4
    %v264 = vrot.slane %v70, 4
    %v265 = vsel %vm250, %v263, %v264
    %v266 = vrot.slane %v71, 4
    %v267 = vrot.slane %v72, 4
    %v268 = vsel %vm250, %v266, %v267
    %vm269 = vcmask 261120
    %v270 = vsel %vm269, %v61, %v105
    %v271 = vsel %vm269, %v62, %v107
    %v272 = vsel %vm269, %v63, %v109
    %v273 = vsel %vm269, %v64, %v111
    %v274 = vsel %vm269, %v65, %v113
    %v275 = vsel %vm269, %v66, %v115
    %v276 = vsel %vm269, %v67, %v117
    %v277 = vsel %vm269, %v68, %v119
    %v278 = vsel %vm269, %v69, %v121
    %v279 = vsel %vm269, %v70, %v123
    %v280 = vsel %vm269, %v71, %v125
    %v281 = vsel %vm269, %v72, %v127
    %vm282 = vcmask 523264
    %v283 = vsel %vm282, %v270, %v160
    %v284 = vsel %vm282, %v271, %v162
    %v285 = vsel %vm282, %v272, %v164
    %v286 = vsel %vm282, %v273, %v166
    %v287 = vsel %vm282, %v274, %v168
    %v288 = vsel %vm282, %v275, %v170
    %v289 = vsel %vm282, %v276, %v172
    %v290 = vsel %vm282, %v277, %v174
    %v291 = vsel %vm282, %v278, %v176
    %v292 = vsel %vm282, %v279, %v178
    %v293 = vsel %vm282, %v280, %v180
    %v294 = vsel %vm282, %v281, %v182
    %vm295 = vcmask 785408
    %v296 = vsel %vm295, %v283, %v215
    %v297 = vsel %vm295, %v284, %v217
    %v298 = vsel %vm295, %v285, %v219
    %v299 = vsel %vm295, %v286, %v221
    %v300 = vsel %vm295, %v287, %v223
    %v301 = vsel %vm295, %v288, %v225
    %v302 = vsel %vm295, %v289, %v227
    %v303 = vsel %vm295, %v290, %v229
    %v304 = vsel %vm295, %v291, %v231
    %v305 = vsel %vm295, %v292, %v233
    %v306 = vsel %vm295, %v293, %v235
    %v307 = vsel %vm295, %v294, %v237
    %v320 = vcombine.low %v296, %v253
    %v321 = vcombine.high %v296, %v253
    %v323 = vunpack.c.l.s4 1983009808
    %v324 = vunpack.c.0.s8 %v323
    %v325 = vlaneseq
    %v326 = vshrl.u32 %v325, 7
    %v327 = vsub.s32 %v324, %v326
    %v328 = vrot.slane %v320, %v327
    %v330 = vunpack.c.l.s4 1983009808
    %v331 = vunpack.c.0.s8 %v330
    %v332 = vlaneseq
    %v333 = vshrl.u32 %v332, 7
    %v334 = vsub.s32 %v331, %v333
    %v335 = vrot.slane %v321, %v334
    %v336 = vcombine.high %v328, %v328
    %v337 = vcombine.high %v335, %v335
    %v338 = vcombine.low %v297, %v252
    %v340 = vunpack.c.l.s4 1983009808
    %v341 = vunpack.c.0.s8 %v340
    %v342 = vlaneseq
    %v343 = vshrl.u32 %v342, 7
    %v344 = vsub.s32 %v341, %v343
    %v345 = vrot.slane %v338, %v344
    %v346 = vcombine.low %v298, %v256
    %v347 = vcombine.high %v298, %v256
    %v349 = vunpack.c.l.s4 1983009808
    %v350 = vunpack.c.0.s8 %v349
    %v351 = vlaneseq
    %v352 = vshrl.u32 %v351, 7
    %v353 = vsub.s32 %v350, %v352
    %v354 = vrot.slane %v346, %v353
    %v356 = vunpack.c.l.s4 1983009808
    %v357 = vunpack.c.0.s8 %v356
    %v358 = vlaneseq
    %v359 = vshrl.u32 %v358, 7
    %v360 = vsub.s32 %v357, %v359
    %v361 = vrot.slane %v347, %v360
    %v362 = vcombine.high %v354, %v354
    %v363 = vcombine.high %v361, %v361
    %v364 = vcombine.low %v299, %v255
    %v366 = vunpack.c.l.s4 1983009808
    %v367 = vunpack.c.0.s8 %v366
    %v368 = vlaneseq
    %v369 = vshrl.u32 %v368, 7
    %v370 = vsub.s32 %v367, %v369
    %v371 = vrot.slane %v364, %v370
    %v372 = vcombine.low %v300, %v259
    %v373 = vcombine.high %v300, %v259
    %v375 = vunpack.c.l.s4 1983009808
    %v376 = vunpack.c.0.s8 %v375
    %v377 = vlaneseq
    %v378 = vshrl.u32 %v377, 7
    %v379 = vsub.s32 %v376, %v378
    %v380 = vrot.slane %v372, %v379
    %v382 = vunpack.c.l.s4 1983009808
    %v383 = vunpack.c.0.s8 %v382
    %v384 = vlaneseq
    %v385 = vshrl.u32 %v384, 7
    %v386 = vsub.s32 %v383, %v385
    %v387 = vrot.slane %v373, %v386
    %v388 = vcombine.high %v380, %v380
    %v389 = vcombine.high %v387, %v387
    %v390 = vcombine.low %v301, %v258
    %v392 = vunpack.c.l.s4 1983009808
    %v393 = vunpack.c.0.s8 %v392
    %v394 = vlaneseq
    %v395 = vshrl.u32 %v394, 7
    %v396 = vsub.s32 %v393, %v395
    %v397 = vrot.slane %v390, %v396
    %v398 = vcombine.low %v302, %v262
    %v399 = vcombine.high %v302, %v262
    %v401 = vunpack.c.l.s4 1983009808
    %v402 = vunpack.c.0.s8 %v401
    %v403 = vlaneseq
    %v404 = vshrl.u32 %v403, 7
    %v405 = vsub.s32 %v402, %v404
    %v406 = vrot.slane %v398, %v405
    %v408 = vunpack.c.l.s4 1983009808
    %v409 = vunpack.c.0.s8 %v408
    %v410 = vlaneseq
    %v411 = vshrl.u32 %v410, 7
    %v412 = vsub.s32 %v409, %v411
    %v413 = vrot.slane %v399, %v412
    %v414 = vcombine.high %v406, %v406
    %v415 = vcombine.high %v413, %v413
    %v416 = vcombine.low %v303, %v261
    %v418 = vunpack.c.l.s4 1983009808
    %v419 = vunpack.c.0.s8 %v418
    %v420 = vlaneseq
    %v421 = vshrl.u32 %v420, 7
    %v422 = vsub.s32 %v419, %v421
    %v423 = vrot.slane %v416, %v422
    %v424 = vcombine.low %v304, %v265
    %v425 = vcombine.high %v304, %v265
    %v427 = vunpack.c.l.s4 1983009808
    %v428 = vunpack.c.0.s8 %v427
    %v429 = vlaneseq
    %v430 = vshrl.u32 %v429, 7
    %v431 = vsub.s32 %v428, %v430
    %v432 = vrot.slane %v424, %v431
    %v434 = vunpack.c.l.s4 1983009808
    %v435 = vunpack.c.0.s8 %v434
    %v436 = vlaneseq
    %v437 = vshrl.u32 %v436, 7
    %v438 = vsub.s32 %v435, %v437
    %v439 = vrot.slane %v425, %v438
    %v440 = vcombine.high %v432, %v432
    %v441 = vcombine.high %v439, %v439
    %v442 = vcombine.low %v305, %v264
    %v444 = vunpack.c.l.s4 1983009808
    %v445 = vunpack.c.0.s8 %v444
    %v446 = vlaneseq
    %v447 = vshrl.u32 %v446, 7
    %v448 = vsub.s32 %v445, %v447
    %v449 = vrot.slane %v442, %v448
    %v450 = vcombine.low %v306, %v268
    %v451 = vcombine.high %v306, %v268
    %v453 = vunpack.c.l.s4 1983009808
    %v454 = vunpack.c.0.s8 %v453
    %v455 = vlaneseq
    %v456 = vshrl.u32 %v455, 7
    %v457 = vsub.s32 %v454, %v456
    %v458 = vrot.slane %v450, %v457
    %v460 = vunpack.c.l.s4 1983009808
    %v461 = vunpack.c.0.s8 %v460
    %v462 = vlaneseq
    %v463 = vshrl.u32 %v462, 7
    %v464 = vsub.s32 %v461, %v463
    %v465 = vrot.slane %v451, %v464
    %v466 = vcombine.high %v458, %v458
    %v467 = vcombine.high %v465, %v465
    %v468 = vcombine.low %v307, %v267
    %v470 = vunpack.c.l.s4 1983009808
    %v471 = vunpack.c.0.s8 %v470
    %v472 = vlaneseq
    %v473 = vshrl.u32 %v472, 7
    %v474 = vsub.s32 %v471, %v473
    %v475 = vrot.slane %v468, %v474
    %v476 = vld [vmem:[%s1] sm:$0xff]
    %v477 = vld [vmem:[%s1 + $0x8] sm:$0xff]
    %v478 = vld [vmem:[%s1 + $0x10] sm:$0xff]
    %v479 = vld [vmem:[%s1 + $0x18] sm:$0xff]
    %v480 = vld [vmem:[%s1 + $0x20] sm:$0xff]
    %v481 = vld [vmem:[%s1 + $0x28] sm:$0xff]
    %v482 = vld [vmem:[%s1 + $0x30] sm:$0xff]
    %v483 = vld [vmem:[%s1 + $0x38] sm:$0xff]
    %v484 = vld [vmem:[%s1 + $0x40] sm:$0xff]
    %v485 = vld [vmem:[%s1 + $0x48] sm:$0xff]
    %v486 = vld [vmem:[%s1 + $0x50] sm:$0xff]
    %v487 = vld [vmem:[%s1 + $0x58] sm:$0xff]
    %v488 = vld [vmem:[%s1 + $0x60] sm:$0xff]
    %v489 = vld [vmem:[%s1 + $0x68] sm:$0xff]
    %v490 = vld [vmem:[%s1 + $0x70] sm:$0xff]
    %v491 = vld [vmem:[%s1 + $0x78] sm:$0xff]
    %v492 = vld [vmem:[%s1 + $0x80] sm:$0xff]
    %v493 = vld [vmem:[%s1 + $0x88] sm:$0xff]
    %v494 = vld [vmem:[%s1 + $0x90] sm:$0xff]
    %v495 = vld [vmem:[%s1 + $0x98] sm:$0xff]
    %v496 = vld [vmem:[%s2] sm:$0x1]
    %v498 = vlaneseq
    %v499 = vshrl.u32 %v498, 7
    %v500 = vsub.s32 0, %v499
    %v501 = vrot.slane %v496, %v500
    %v503 = vcombine.low %v328, %v336
    %v504 = vcombine.low %v335, %v337
    %v506 = vunpack.c.l.s4 1983009808
    %v507 = vunpack.c.0.s8 %v506
    %v508 = vlaneseq
    %v509 = vshrl.u32 %v508, 7
    %v510 = vsub.s32 %v507, %v509
    %v511 = vrot.slane %v503, %v510
    %v513 = vunpack.c.l.s4 1983009808
    %v514 = vunpack.c.0.s8 %v513
    %v515 = vlaneseq
    %v516 = vshrl.u32 %v515, 7
    %v517 = vsub.s32 %v514, %v516
    %v518 = vrot.slane %v504, %v517
    %v519 = vcombine.low %v511, %v518
    %v520 = vcombine.high %v511, %v518
    %v521 = vcombine.low %v345, %v354
    %v522 = vcombine.low %v362, %v361
    %v524 = vunpack.c.l.s4 1983009808
    %v525 = vunpack.c.0.s8 %v524
    %v526 = vlaneseq
    %v527 = vshrl.u32 %v526, 7
    %v528 = vsub.s32 %v525, %v527
    %v529 = vrot.slane %v521, %v528
    %v531 = vunpack.c.l.s4 1983009808
    %v532 = vunpack.c.0.s8 %v531
    %v533 = vlaneseq
    %v534 = vshrl.u32 %v533, 7
    %v535 = vsub.s32 %v532, %v534
    %v536 = vrot.slane %v522, %v535
    %v537 = vcombine.low %v529, %v536
    %v538 = vcombine.high %v529, %v536
    %v539 = vcombine.low %v363, %v371
    %v540 = vcombine.low %v380, %v388
    %v542 = vunpack.c.l.s4 1983009808
    %v543 = vunpack.c.0.s8 %v542
    %v544 = vlaneseq
    %v545 = vshrl.u32 %v544, 7
    %v546 = vsub.s32 %v543, %v545
    %v547 = vrot.slane %v539, %v546
    %v549 = vunpack.c.l.s4 1983009808
    %v550 = vunpack.c.0.s8 %v549
    %v551 = vlaneseq
    %v552 = vshrl.u32 %v551, 7
    %v553 = vsub.s32 %v550, %v552
    %v554 = vrot.slane %v540, %v553
    %v555 = vcombine.low %v547, %v554
    %v556 = vcombine.high %v547, %v554
    %v557 = vcombine.low %v387, %v389
    %v558 = vcombine.low %v397, %v406
    %v560 = vunpack.c.l.s4 1983009808
    %v561 = vunpack.c.0.s8 %v560
    %v562 = vlaneseq
    %v563 = vshrl.u32 %v562, 7
    %v564 = vsub.s32 %v561, %v563
    %v565 = vrot.slane %v557, %v564
    %v567 = vunpack.c.l.s4 1983009808
    %v568 = vunpack.c.0.s8 %v567
    %v569 = vlaneseq
    %v570 = vshrl.u32 %v569, 7
    %v571 = vsub.s32 %v568, %v570
    %v572 = vrot.slane %v558, %v571
    %v573 = vcombine.low %v565, %v572
    %v574 = vcombine.high %v565, %v572
    %v575 = vcombine.low %v414, %v413
    %v576 = vcombine.low %v415, %v423
    %v578 = vunpack.c.l.s4 1983009808
    %v579 = vunpack.c.0.s8 %v578
    %v580 = vlaneseq
    %v581 = vshrl.u32 %v580, 7
    %v582 = vsub.s32 %v579, %v581
    %v583 = vrot.slane %v575, %v582
    %v585 = vunpack.c.l.s4 1983009808
    %v586 = vunpack.c.0.s8 %v585
    %v587 = vlaneseq
    %v588 = vshrl.u32 %v587, 7
    %v589 = vsub.s32 %v586, %v588
    %v590 = vrot.slane %v576, %v589
    %v591 = vcombine.low %v583, %v590
    %v592 = vcombine.high %v583, %v590
    %v593 = vcombine.low %v432, %v440
    %v594 = vcombine.low %v439, %v441
    %v596 = vunpack.c.l.s4 1983009808
    %v597 = vunpack.c.0.s8 %v596
    %v598 = vlaneseq
    %v599 = vshrl.u32 %v598, 7
    %v600 = vsub.s32 %v597, %v599
    %v601 = vrot.slane %v593, %v600
    %v603 = vunpack.c.l.s4 1983009808
    %v604 = vunpack.c.0.s8 %v603
    %v605 = vlaneseq
    %v606 = vshrl.u32 %v605, 7
    %v607 = vsub.s32 %v604, %v606
    %v608 = vrot.slane %v594, %v607
    %v609 = vcombine.low %v601, %v608
    %v610 = vcombine.high %v601, %v608
    %v611 = vcombine.low %v449, %v458
    %v612 = vcombine.low %v466, %v465
    %v614 = vunpack.c.l.s4 1983009808
    %v615 = vunpack.c.0.s8 %v614
    %v616 = vlaneseq
    %v617 = vshrl.u32 %v616, 7
    %v618 = vsub.s32 %v615, %v617
    %v619 = vrot.slane %v611, %v618
    %v621 = vunpack.c.l.s4 1983009808
    %v622 = vunpack.c.0.s8 %v621
    %v623 = vlaneseq
    %v624 = vshrl.u32 %v623, 7
    %v625 = vsub.s32 %v622, %v624
    %v626 = vrot.slane %v612, %v625
    %v627 = vcombine.low %v619, %v626
    %v628 = vcombine.high %v619, %v626
    %v629 = vcombine.low %v467, %v475
    %v631 = vunpack.c.l.s4 1983009808
    %v632 = vunpack.c.0.s8 %v631
    %v633 = vlaneseq
    %v634 = vshrl.u32 %v633, 7
    %v635 = vsub.s32 %v632, %v634
    %v636 = vrot.slane %v629, %v635
    %v637 = vcombine.high %v636, %v636
    %v646 = vsel %vm269, %v520, 0
    %v648 = vsel %vm269, %v538, 0
    %v650 = vsel %vm269, %v556, 0
    %v652 = vsel %vm269, %v574, 0
    %v654 = vsel %vm269, %v592, 0
    %v656 = vsel %vm269, %v610, 0
    %v658 = vsel %vm269, %v628, 0
    %v660 = vsel %vm269, %v637, 0
    %662 = vmatprep.subr.mxu0 0.0
    %663 = vmatpush1.msra.mxu0 %v476
    %664 = vmatprep.subr.mxu0 0.0
    %665 = vmatpush1.msra.mxu0 %v477
    %666 = vmatprep.subr.mxu0 0.0
    %667 = vmatpush1.msra.mxu0 %v478
    %668 = vmatprep.subr.mxu0 0.0
    %669 = vmatpush1.msra.mxu0 %v479
    %670 = vmatprep.subr.mxu0 0.0
    %671 = vmatpush1.msra.mxu0 %v480
    %672 = vmatprep.subr.mxu0 0.0
    %673 = vmatpush1.msra.mxu0 %v481
    %674 = vmatprep.subr.mxu0 0.0
    %675 = vmatpush1.msra.mxu0 %v482
    %676 = vmatprep.subr.mxu0 0.0
    %677 = vmatpush1.msra.mxu0 %v483
    %678 = vmatprep.subr.mxu0 0.0
    %679 = vmatpush1.msra.mxu0 %v484
    %680 = vmatprep.subr.mxu0 0.0
    %681 = vmatpush1.msra.mxu0 %v485
    %682 = vmatprep.subr.mxu0 0.0
    %683 = vmatpush1.msra.mxu0 %v486
    %684 = vmatprep.subr.mxu0 0.0
    %685 = vmatpush1.msra.mxu0 %v487
    %686 = vmatprep.subr.mxu0 0.0
    %687 = vmatpush1.msra.mxu0 %v488
    %688 = vmatprep.subr.mxu0 0.0
    %689 = vmatpush1.msra.mxu0 %v489
    %690 = vmatprep.subr.mxu0 0.0
    %691 = vmatpush1.msra.mxu0 %v490
    %692 = vmatprep.subr.mxu0 0.0
    %693 = vmatpush1.msra.mxu0 %v491
    %694 = vmatprep.subr.mxu0 0.0
    %695 = vmatpush1.msra.mxu0 %v492
    %696 = vmatprep.subr.mxu0 0.0
    %697 = vmatpush1.msra.mxu0 %v493
    %698 = vmatprep.subr.mxu0 0.0
    %699 = vmatpush1.msra.mxu0 %v494
    %700 = vmatprep.subr.mxu0 0.0
    %701 = vmatpush1.msra.mxu0 %v495
    %702 = vmatprep.subr.mxu0 0.0
    %703 = vmatpush1.msra.mxu0 0.0
    %704 = vmatprep.subr.mxu0 0.0
    %705 = vmatpush1.msra.mxu0 0.0
    %706 = vmatprep.subr.mxu0 0.0
    %707 = vmatpush1.msra.mxu0 0.0
    %708 = vmatprep.subr.mxu0 0.0
    %709 = vmatpush1.msra.mxu0 0.0
    %710 = vmatprep.subr.mxu0 0.0
    %711 = vmatpush1.msra.mxu0 0.0
    %712 = vmatprep.subr.mxu0 0.0
    %713 = vmatpush1.msra.mxu0 0.0
    %714 = vmatprep.subr.mxu0 0.0
    %715 = vmatpush1.msra.mxu0 0.0
    %716 = vmatprep.subr.mxu0 0.0
    %717 = vmatpush1.msra.mxu0 0.0
    %718 = vmatprep.subr.mxu0 0.0
    %719 = vmatpush1.msra.mxu0 0.0
    %720 = vmatprep.subr.mxu0 0.0
    %721 = vmatpush1.msra.mxu0 0.0
    %722 = vmatprep.subr.mxu0 0.0
    %723 = vmatpush1.msra.mxu0 0.0
    %724 = vmatprep.subr.mxu0 0.0
    %725 = vmatpush1.msra.mxu0 0.0
    %726 = vmatprep.mubr.f32.mxu0 %v646
    %727 = vmatmul.mubr.f32.gmra.mrb[0].mxu0 %v519
    %v728 = vpop.f32.mrb[0].mxu0
    %v729 = vadd.f32 %v501, %v728
    %v730 = vpop.f32.mrb[0].mxu0
    %731 = vmatprep.mubr.f32.mxu0 %v648
    %732 = vmatmul.mubr.f32.gmra.mrb[0].mxu0 %v537
    %v733 = vpop.f32.mrb[0].mxu0
    %v734 = vadd.f32 %v501, %v733
    %v735 = vpop.f32.mrb[0].mxu0
    %736 = vmatprep.mubr.f32.mxu0 %v650
    %737 = vmatmul.mubr.f32.gmra.mrb[0].mxu0 %v555
    %v738 = vpop.f32.mrb[0].mxu0
    %v739 = vadd.f32 %v501, %v738
    %v740 = vpop.f32.mrb[0].mxu0
    %741 = vmatprep.mubr.f32.mxu0 %v652
    %742 = vmatmul.mubr.f32.gmra.mrb[0].mxu0 %v573
    %v743 = vpop.f32.mrb[0].mxu0
    %v744 = vadd.f32 %v501, %v743
    %v745 = vpop.f32.mrb[0].mxu0
    %746 = vmatprep.mubr.f32.mxu0 %v654
    %747 = vmatmul.mubr.f32.gmra.mrb[0].mxu0 %v591
    %v748 = vpop.f32.mrb[0].mxu0
    %v749 = vadd.f32 %v501, %v748
    %v750 = vpop.f32.mrb[0].mxu0
    %751 = vmatprep.mubr.f32.mxu0 %v656
    %752 = vmatmul.mubr.f32.gmra.mrb[0].mxu0 %v609
    %v753 = vpop.f32.mrb[0].mxu0
    %v754 = vadd.f32 %v501, %v753
    %v755 = vpop.f32.mrb[0].mxu0
    %756 = vmatprep.mubr.f32.mxu0 %v658
    %757 = vmatmul.mubr.f32.gmra.mrb[0].mxu0 %v627
    %v758 = vpop.f32.mrb[0].mxu0
    %v759 = vadd.f32 %v501, %v758
    %v760 = vpop.f32.mrb[0].mxu0
    %761 = vmatprep.mubr.f32.mxu0 %v660
    %762 = vmatmul.mubr.f32.gmra.mrb[0].mxu0 %v636
    %v763 = vpop.f32.mrb[0].mxu0
    %v764 = vadd.f32 %v501, %v763
    %v765 = vpop.f32.mrb[0].mxu0
    %766 = vdwg.mxu0
    %v767 = vmax.f32 %v729, 0.0
    %v768 = vmax.f32 %v734, 0.0
    %v769 = vmax.f32 %v739, 0.0
    %v770 = vmax.f32 %v744, 0.0
    %v771 = vmax.f32 %v749, 0.0
    %v772 = vmax.f32 %v754, 0.0
    %v773 = vmax.f32 %v759, 0.0
    %v774 = vmax.f32 %v764, 0.0
    %v783 = vcombine.high %v767, %v767
    %v785 = vunpack.c.l.s4 1983009808
    %v786 = vunpack.c.0.s8 %v785
    %v787 = vlaneseq
    %v788 = vshrl.u32 %v787, 7
    %v789 = vsub.s32 %v786, %v788
    %v790 = vrot.slane %v767, %v789
    %v792 = vunpack.c.l.s4 1983009808
    %v793 = vunpack.c.0.s8 %v792
    %v794 = vlaneseq
    %v795 = vshrl.u32 %v794, 7
    %v796 = vsub.s32 %v793, %v795
    %v797 = vrot.slane %v783, %v796
    %v798 = vcombine.high %v790, %v790
    %v799 = vcombine.high %v797, %v797
    %v800 = vcombine.high %v768, %v768
    %v802 = vunpack.c.l.s4 1983009808
    %v803 = vunpack.c.0.s8 %v802
    %v804 = vlaneseq
    %v805 = vshrl.u32 %v804, 7
    %v806 = vsub.s32 %v803, %v805
    %v807 = vrot.slane %v768, %v806
    %v809 = vunpack.c.l.s4 1983009808
    %v810 = vunpack.c.0.s8 %v809
    %v811 = vlaneseq
    %v812 = vshrl.u32 %v811, 7
    %v813 = vsub.s32 %v810, %v812
    %v814 = vrot.slane %v800, %v813
    %v815 = vcombine.high %v807, %v807
    %v816 = vcombine.high %v814, %v814
    %v817 = vcombine.high %v769, %v769
    %v819 = vunpack.c.l.s4 1983009808
    %v820 = vunpack.c.0.s8 %v819
    %v821 = vlaneseq
    %v822 = vshrl.u32 %v821, 7
    %v823 = vsub.s32 %v820, %v822
    %v824 = vrot.slane %v769, %v823
    %v826 = vunpack.c.l.s4 1983009808
    %v827 = vunpack.c.0.s8 %v826
    %v828 = vlaneseq
    %v829 = vshrl.u32 %v828, 7
    %v830 = vsub.s32 %v827, %v829
    %v831 = vrot.slane %v817, %v830
    %v832 = vcombine.high %v824, %v824
    %v833 = vcombine.high %v831, %v831
    %v834 = vcombine.high %v770, %v770
    %v836 = vunpack.c.l.s4 1983009808
    %v837 = vunpack.c.0.s8 %v836
    %v838 = vlaneseq
    %v839 = vshrl.u32 %v838, 7
    %v840 = vsub.s32 %v837, %v839
    %v841 = vrot.slane %v770, %v840
    %v843 = vunpack.c.l.s4 1983009808
    %v844 = vunpack.c.0.s8 %v843
    %v845 = vlaneseq
    %v846 = vshrl.u32 %v845, 7
    %v847 = vsub.s32 %v844, %v846
    %v848 = vrot.slane %v834, %v847
    %v849 = vcombine.high %v841, %v841
    %v850 = vcombine.high %v848, %v848
    %v851 = vcombine.high %v771, %v771
    %v853 = vunpack.c.l.s4 1983009808
    %v854 = vunpack.c.0.s8 %v853
    %v855 = vlaneseq
    %v856 = vshrl.u32 %v855, 7
    %v857 = vsub.s32 %v854, %v856
    %v858 = vrot.slane %v771, %v857
    %v860 = vunpack.c.l.s4 1983009808
    %v861 = vunpack.c.0.s8 %v860
    %v862 = vlaneseq
    %v863 = vshrl.u32 %v862, 7
    %v864 = vsub.s32 %v861, %v863
    %v865 = vrot.slane %v851, %v864
    %v866 = vcombine.high %v858, %v858
    %v867 = vcombine.high %v865, %v865
    %v868 = vcombine.high %v772, %v772
    %v870 = vunpack.c.l.s4 1983009808
    %v871 = vunpack.c.0.s8 %v870
    %v872 = vlaneseq
    %v873 = vshrl.u32 %v872, 7
    %v874 = vsub.s32 %v871, %v873
    %v875 = vrot.slane %v772, %v874
    %v877 = vunpack.c.l.s4 1983009808
    %v878 = vunpack.c.0.s8 %v877
    %v879 = vlaneseq
    %v880 = vshrl.u32 %v879, 7
    %v881 = vsub.s32 %v878, %v880
    %v882 = vrot.slane %v868, %v881
    %v883 = vcombine.high %v875, %v875
    %v884 = vcombine.high %v882, %v882
    %v885 = vcombine.high %v773, %v773
    %v887 = vunpack.c.l.s4 1983009808
    %v888 = vunpack.c.0.s8 %v887
    %v889 = vlaneseq
    %v890 = vshrl.u32 %v889, 7
    %v891 = vsub.s32 %v888, %v890
    %v892 = vrot.slane %v773, %v891
    %v894 = vunpack.c.l.s4 1983009808
    %v895 = vunpack.c.0.s8 %v894
    %v896 = vlaneseq
    %v897 = vshrl.u32 %v896, 7
    %v898 = vsub.s32 %v895, %v897
    %v899 = vrot.slane %v885, %v898
    %v900 = vcombine.high %v892, %v892
    %v901 = vcombine.high %v899, %v899
    %v903 = vunpack.c.l.s4 1983009808
    %v904 = vunpack.c.0.s8 %v903
    %v905 = vlaneseq
    %v906 = vshrl.u32 %v905, 7
    %v907 = vsub.s32 %v904, %v906
    %v908 = vrot.slane %v774, %v907
    %v909 = vcombine.high %v908, %v908
    %v910 = vlaneseq
    %v911 = vshrl.u32 %v910, 7
    %v912 = vadd.s32 %v911, 8
    %v913 = vlaneseq
    %v914 = vand.u32 %v913, 127
    %vm915 = vcmp.lt.s32.totalorder %v914, 8
    %vm916 = vcmp.lt.s32.totalorder %v914, 16
    %v917 = vsel %vm916, 9, 8
    %v918 = vsel %vm915, 10, %v917
    %vm919 = vcmp.lt.s32.totalorder %v911, %v918
    %vm920 = vcmp.lt.s32.totalorder %v912, %v918
    %v921 = vsel %vm919, 1, 0
    %v922 = vsel %vm920, 1, 0
    %vm923 = vcmp.eq.s32.totalorder %v921, 1
    %vm924 = vcmp.eq.s32.totalorder %v922, 1
    %v925 = vcombine.low %v790, %v798
    %v926 = vcombine.low %v797, %v799
    %v928 = vunpack.c.l.s4 1983009808
    %v929 = vunpack.c.0.s8 %v928
    %v930 = vlaneseq
    %v931 = vshrl.u32 %v930, 7
    %v932 = vsub.s32 %v929, %v931
    %v933 = vrot.slane %v925, %v932
    %v935 = vunpack.c.l.s4 1983009808
    %v936 = vunpack.c.0.s8 %v935
    %v937 = vlaneseq
    %v938 = vshrl.u32 %v937, 7
    %v939 = vsub.s32 %v936, %v938
    %v940 = vrot.slane %v926, %v939
    %v941 = vcombine.low %v933, %v940
    %v943 = vunpack.c.l.s4 1983009808
    %v944 = vunpack.c.0.s8 %v943
    %v945 = vlaneseq
    %v946 = vshrl.u32 %v945, 7
    %v947 = vsub.s32 %v944, %v946
    %v948 = vrot.slane %v807, %v947
    %v949 = vcombine.low %v815, %v814
    %v950 = vcombine.low %v816, %v824
    %v952 = vunpack.c.l.s4 1983009808
    %v953 = vunpack.c.0.s8 %v952
    %v954 = vlaneseq
    %v955 = vshrl.u32 %v954, 7
    %v956 = vsub.s32 %v953, %v955
    %v957 = vrot.slane %v949, %v956
    %v959 = vunpack.c.l.s4 1983009808
    %v960 = vunpack.c.0.s8 %v959
    %v961 = vlaneseq
    %v962 = vshrl.u32 %v961, 7
    %v963 = vsub.s32 %v960, %v962
    %v964 = vrot.slane %v950, %v963
    %v965 = vcombine.low %v957, %v964
    %v967 = vunpack.c.l.s4 1983009808
    %v968 = vunpack.c.0.s8 %v967
    %v969 = vlaneseq
    %v970 = vshrl.u32 %v969, 7
    %v971 = vsub.s32 %v968, %v970
    %v972 = vrot.slane %v832, %v971
    %v973 = vcombine.low %v831, %v833
    %v974 = vcombine.low %v841, %v849
    %v976 = vunpack.c.l.s4 1983009808
    %v977 = vunpack.c.0.s8 %v976
    %v978 = vlaneseq
    %v979 = vshrl.u32 %v978, 7
    %v980 = vsub.s32 %v977, %v979
    %v981 = vrot.slane %v973, %v980
    %v983 = vunpack.c.l.s4 1983009808
    %v984 = vunpack.c.0.s8 %v983
    %v985 = vlaneseq
    %v986 = vshrl.u32 %v985, 7
    %v987 = vsub.s32 %v984, %v986
    %v988 = vrot.slane %v974, %v987
    %v989 = vcombine.low %v981, %v988
    %v991 = vunpack.c.l.s4 1983009808
    %v992 = vunpack.c.0.s8 %v991
    %v993 = vlaneseq
    %v994 = vshrl.u32 %v993, 7
    %v995 = vsub.s32 %v992, %v994
    %v996 = vrot.slane %v848, %v995
    %v997 = vcombine.low %v850, %v858
    %v998 = vcombine.low %v866, %v865
    %v1000 = vunpack.c.l.s4 1983009808
    %v1001 = vunpack.c.0.s8 %v1000
    %v1002 = vlaneseq
    %v1003 = vshrl.u32 %v1002, 7
    %v1004 = vsub.s32 %v1001, %v1003
    %v1005 = vrot.slane %v997, %v1004
    %v1007 = vunpack.c.l.s4 1983009808
    %v1008 = vunpack.c.0.s8 %v1007
    %v1009 = vlaneseq
    %v1010 = vshrl.u32 %v1009, 7
    %v1011 = vsub.s32 %v1008, %v1010
    %v1012 = vrot.slane %v998, %v1011
    %v1013 = vcombine.low %v1005, %v1012
    %v1015 = vunpack.c.l.s4 1983009808
    %v1016 = vunpack.c.0.s8 %v1015
    %v1017 = vlaneseq
    %v1018 = vshrl.u32 %v1017, 7
    %v1019 = vsub.s32 %v1016, %v1018
    %v1020 = vrot.slane %v867, %v1019
    %v1021 = vcombine.low %v875, %v883
    %v1022 = vcombine.low %v882, %v884
    %v1024 = vunpack.c.l.s4 1983009808
    %v1025 = vunpack.c.0.s8 %v1024
    %v1026 = vlaneseq
    %v1027 = vshrl.u32 %v1026, 7
    %v1028 = vsub.s32 %v1025, %v1027
    %v1029 = vrot.slane %v1021, %v1028
    %v1031 = vunpack.c.l.s4 1983009808
    %v1032 = vunpack.c.0.s8 %v1031
    %v1033 = vlaneseq
    %v1034 = vshrl.u32 %v1033, 7
    %v1035 = vsub.s32 %v1032, %v1034
    %v1036 = vrot.slane %v1022, %v1035
    %v1037 = vcombine.low %v1029, %v1036
    %v1039 = vunpack.c.l.s4 1983009808
    %v1040 = vunpack.c.0.s8 %v1039
    %v1041 = vlaneseq
    %v1042 = vshrl.u32 %v1041, 7
    %v1043 = vsub.s32 %v1040, %v1042
    %v1044 = vrot.slane %v892, %v1043
    %v1045 = vcombine.low %v900, %v899
    %v1046 = vcombine.low %v901, %v908
    %v1048 = vunpack.c.l.s4 1983009808
    %v1049 = vunpack.c.0.s8 %v1048
    %v1050 = vlaneseq
    %v1051 = vshrl.u32 %v1050, 7
    %v1052 = vsub.s32 %v1049, %v1051
    %v1053 = vrot.slane %v1045, %v1052
    %v1055 = vunpack.c.l.s4 1983009808
    %v1056 = vunpack.c.0.s8 %v1055
    %v1057 = vlaneseq
    %v1058 = vshrl.u32 %v1057, 7
    %v1059 = vsub.s32 %v1056, %v1058
    %v1060 = vrot.slane %v1046, %v1059
    %v1061 = vcombine.low %v1053, %v1060
    %v1063 = vunpack.c.l.s4 1983009808
    %v1064 = vunpack.c.0.s8 %v1063
    %v1065 = vlaneseq
    %v1066 = vshrl.u32 %v1065, 7
    %v1067 = vsub.s32 %v1064, %v1066
    %v1068 = vrot.slane %v909, %v1067
    %v1081 = vsel %vm923, %v941, 0.0
    %v1082 = vsel %vm924, %v948, 0.0
    %v1083 = vsel %vm923, %v965, 0.0
    %v1084 = vsel %vm924, %v972, 0.0
    %v1085 = vsel %vm923, %v989, 0.0
    %v1086 = vsel %vm924, %v996, 0.0
    %v1087 = vsel %vm923, %v1013, 0.0
    %v1088 = vsel %vm924, %v1020, 0.0
    %v1089 = vsel %vm923, %v1037, 0.0
    %v1090 = vsel %vm924, %v1044, 0.0
    %v1091 = vsel %vm923, %v1061, 0.0
    %v1092 = vsel %vm924, %v1068, 0.0
    %vm1093 = vcmask 195584
    %v1094 = vsel %vm1093, %v1081, -inf
    %vm1095 = vcmask 189440
    %v1096 = vsel %vm1095, %v1082, -inf
    %v1097 = vmax.f32 %v1094, %v1096
    %v1098 = vrot.slane %v1097, 4
    %v1099 = vmax.f32 %v1097, %v1098
    %v1100 = vrot.slane %v1099, 2
    %v1101 = vmax.f32 %v1099, %v1100
    %v1102 = vrot.slane %v1101, 1
    %v1103 = vmax.f32 %v1101, %v1102
    %v1104 = vsel %vm1093, %v1083, -inf
    %v1105 = vsel %vm1095, %v1084, -inf
    %v1106 = vmax.f32 %v1104, %v1105
    %v1107 = vrot.slane %v1106, 4
    %v1108 = vmax.f32 %v1106, %v1107
    %v1109 = vrot.slane %v1108, 2
    %v1110 = vmax.f32 %v1108, %v1109
    %v1111 = vrot.slane %v1110, 1
    %v1112 = vmax.f32 %v1110, %v1111
    %v1113 = vsel %vm1093, %v1085, -inf
    %v1114 = vsel %vm1095, %v1086, -inf
    %v1115 = vmax.f32 %v1113, %v1114
    %v1116 = vrot.slane %v1115, 4
    %v1117 = vmax.f32 %v1115, %v1116
    %v1118 = vrot.slane %v1117, 2
    %v1119 = vmax.f32 %v1117, %v1118
    %v1120 = vrot.slane %v1119, 1
    %v1121 = vmax.f32 %v1119, %v1120
    %v1122 = vsel %vm1093, %v1087, -inf
    %v1123 = vsel %vm1095, %v1088, -inf
    %v1124 = vmax.f32 %v1122, %v1123
    %v1125 = vrot.slane %v1124, 4
    %v1126 = vmax.f32 %v1124, %v1125
    %v1127 = vrot.slane %v1126, 2
    %v1128 = vmax.f32 %v1126, %v1127
    %v1129 = vrot.slane %v1128, 1
    %v1130 = vmax.f32 %v1128, %v1129
    %v1131 = vsel %vm1093, %v1089, -inf
    %v1132 = vsel %vm1095, %v1090, -inf
    %v1133 = vmax.f32 %v1131, %v1132
    %v1134 = vrot.slane %v1133, 4
    %v1135 = vmax.f32 %v1133, %v1134
    %v1136 = vrot.slane %v1135, 2
    %v1137 = vmax.f32 %v1135, %v1136
    %v1138 = vrot.slane %v1137, 1
    %v1139 = vmax.f32 %v1137, %v1138
    %v1140 = vsel %vm1093, %v1091, -inf
    %v1141 = vsel %vm1095, %v1092, -inf
    %v1142 = vmax.f32 %v1140, %v1141
    %v1143 = vrot.slane %v1142, 4
    %v1144 = vmax.f32 %v1142, %v1143
    %v1145 = vrot.slane %v1144, 2
    %v1146 = vmax.f32 %v1144, %v1145
    %v1147 = vrot.slane %v1146, 1
    %v1148 = vmax.f32 %v1146, %v1147
    %v1149 = vld [vmem:[%s3] sm:$0xff]
    %v1150 = vld [vmem:[%s3 + $0x8] sm:$0xff]
    %v1151 = vld [vmem:[%s3 + $0x10] sm:$0xff]
    %v1152 = vld [vmem:[%s3 + $0x18] sm:$0xff]
    %v1153 = vld [vmem:[%s3 + $0x20] sm:$0xff]
    %v1154 = vld [vmem:[%s3 + $0x28] sm:$0xff]
    %v1155 = vld [vmem:[%s3 + $0x30] sm:$0xff]
    %v1156 = vld [vmem:[%s3 + $0x38] sm:$0xff]
    %v1157 = vld [vmem:[%s3 + $0x40] sm:$0xff]
    %v1158 = vld [vmem:[%s3 + $0x48] sm:$0xff]
    %v1159 = vld [vmem:[%s3 + $0x50] sm:$0xff]
    %v1160 = vld [vmem:[%s3 + $0x58] sm:$0xff]
    %v1161 = vld [vmem:[%s4] sm:$0xf]
    %v1163 = vlaneseq
    %v1164 = vshrl.u32 %v1163, 7
    %v1165 = vsub.s32 0, %v1164
    %v1166 = vrot.slane %v1161, %v1165
    %v1167 = vlaneseq
    %v1168 = vshrl.u32 %v1167, 7
    %v1169 = vsub.s32 1, %v1168
    %v1170 = vrot.slane %v1161, %v1169
    %v1171 = vlaneseq
    %v1172 = vshrl.u32 %v1171, 7
    %v1173 = vsub.s32 2, %v1172
    %v1174 = vrot.slane %v1161, %v1173
    %v1175 = vlaneseq
    %v1176 = vshrl.u32 %v1175, 7
    %v1177 = vsub.s32 3, %v1176
    %v1178 = vrot.slane %v1161, %v1177
    %vm1189 = vcmask 1041409
    %v1190 = vsel %vm1189, %v1112, %v1103
    %vm1191 = vcmask 1042434
    %v1192 = vsel %vm1191, %v1121, %v1190
    %vm1193 = vcmask 1043459
    %v1194 = vsel %vm1193, %v1130, %v1192
    %vm1195 = vcmask 1044484
    %v1196 = vsel %vm1195, %v1139, %v1194
    %vm1197 = vcmask 1045509
    %v1198 = vsel %vm1197, %v1148, %v1196
    %v1199 = vsel %vm1093, %v1198, 0
    %1201 = vmatprep.subr.mxu0 %v1150
    %1202 = vmatpush1.msra.mxu0 %v1149
    %1203 = vmatprep.subr.mxu0 %v1154
    %1204 = vmatpush1.msra.mxu0 %v1153
    %1205 = vmatprep.subr.mxu0 %v1158
    %1206 = vmatpush1.msra.mxu0 %v1157
    %1207 = vmatprep.subr.mxu0 0.0
    %1208 = vmatpush1.msra.mxu0 0.0
    %1209 = vmatprep.subr.mxu0 0.0
    %1210 = vmatpush1.msra.mxu0 0.0
    %1211 = vmatprep.subr.mxu0 0.0
    %1212 = vmatpush1.msra.mxu0 0.0
    %1213 = vmatprep.subr.mxu0 0.0
    %1214 = vmatpush1.msra.mxu0 0.0
    %1215 = vmatprep.subr.mxu0 0.0
    %1216 = vmatpush1.msra.mxu0 0.0
    %1217 = vmatprep.subr.mxu0 0.0
    %1218 = vmatpush1.msra.mxu0 0.0
    %1219 = vmatprep.subr.mxu0 0.0
    %1220 = vmatpush1.msra.mxu0 0.0
    %1221 = vmatprep.subr.mxu0 0.0
    %1222 = vmatpush1.msra.mxu0 0.0
    %1223 = vmatprep.subr.mxu0 0.0
    %1224 = vmatpush1.msra.mxu0 0.0
    %1225 = vmatprep.subr.mxu0 0.0
    %1226 = vmatpush1.msra.mxu0 0.0
    %1227 = vmatprep.subr.mxu0 0.0
    %1228 = vmatpush1.msra.mxu0 0.0
    %1229 = vmatprep.subr.mxu0 0.0
    %1230 = vmatpush1.msra.mxu0 0.0
    %1231 = vmatprep.subr.mxu0 0.0
    %1232 = vmatpush1.msra.mxu0 0.0
    %1233 = vmatprep.subr.mxu0 0.0
    %1234 = vmatpush1.msra.mxu0 0.0
    %1235 = vmatprep.subr.mxu0 0.0
    %1236 = vmatpush1.msra.mxu0 0.0
    %1237 = vmatprep.subr.mxu0 0.0
    %1238 = vmatpush1.msra.mxu0 0.0
    %1239 = vmatprep.subr.mxu0 0.0
    %1240 = vmatpush1.msra.mxu0 0.0
    %1241 = vmatprep.subr.mxu0 0.0
    %1242 = vmatpush1.msra.mxu0 0.0
    %1243 = vmatprep.subr.mxu0 0.0
    %1244 = vmatpush1.msra.mxu0 0.0
    %1245 = vmatprep.subr.mxu0 0.0
    %1246 = vmatpush1.msra.mxu0 0.0
    %1247 = vmatprep.subr.mxu0 0.0
    %1248 = vmatpush1.msra.mxu0 0.0
    %1249 = vmatprep.subr.mxu0 0.0
    %1250 = vmatpush1.msra.mxu0 0.0
    %1251 = vmatprep.subr.mxu0 0.0
    %1252 = vmatpush1.msra.mxu0 0.0
    %1253 = vmatprep.subr.mxu0 0.0
    %1254 = vmatpush1.msra.mxu0 0.0
    %1255 = vmatprep.subr.mxu0 0.0
    %1256 = vmatpush1.msra.mxu0 0.0
    %1257 = vmatprep.subr.mxu0 0.0
    %1258 = vmatpush1.msra.mxu0 0.0
    %1259 = vmatprep.subr.mxu0 0.0
    %1260 = vmatpush1.msra.mxu0 0.0
    %1261 = vmatprep.subr.mxu0 0.0
    %1262 = vmatpush1.msra.mxu0 0.0
    %1263 = vmatprep.subr.mxu0 0.0
    %1264 = vmatpush1.msra.mxu0 0.0
    %1265 = vmatprep.mubr.f32.mxu0 0.0
    %1266 = vmatmul.mubr.f32.gmra.mrb[0].mxu0 %v1199
    %v1267 = vpop.f32.mrb[0].mxu0
    %v1268 = vadd.f32 %v1166, %v1267
    %v1269 = vpop.f32.mrb[0].mxu0
    %v1270 = vadd.f32 %v1170, %v1269
    %1271 = vdwg.mxu0
    %1272 = vmatprep.subr.mxu0 %v1152
    %1273 = vmatpush1.msra.mxu0 %v1151
    %1274 = vmatprep.subr.mxu0 %v1156
    %1275 = vmatpush1.msra.mxu0 %v1155
    %1276 = vmatprep.subr.mxu0 %v1160
    %1277 = vmatpush1.msra.mxu0 %v1159
    %1278 = vmatprep.subr.mxu0 0.0
    %1279 = vmatpush1.msra.mxu0 0.0
    %1280 = vmatprep.subr.mxu0 0.0
    %1281 = vmatpush1.msra.mxu0 0.0
    %1282 = vmatprep.subr.mxu0 0.0
    %1283 = vmatpush1.msra.mxu0 0.0
    %1284 = vmatprep.subr.mxu0 0.0
    %1285 = vmatpush1.msra.mxu0 0.0
    %1286 = vmatprep.subr.mxu0 0.0
    %1287 = vmatpush1.msra.mxu0 0.0
    %1288 = vmatprep.subr.mxu0 0.0
    %1289 = vmatpush1.msra.mxu0 0.0
    %1290 = vmatprep.subr.mxu0 0.0
    %1291 = vmatpush1.msra.mxu0 0.0
    %1292 = vmatprep.subr.mxu0 0.0
    %1293 = vmatpush1.msra.mxu0 0.0
    %1294 = vmatprep.subr.mxu0 0.0
    %1295 = vmatpush1.msra.mxu0 0.0
    %1296 = vmatprep.subr.mxu0 0.0
    %1297 = vmatpush1.msra.mxu0 0.0
    %1298 = vmatprep.subr.mxu0 0.0
    %1299 = vmatpush1.msra.mxu0 0.0
    %1300 = vmatprep.subr.mxu0 0.0
    %1301 = vmatpush1.msra.mxu0 0.0
    %1302 = vmatprep.subr.mxu0 0.0
    %1303 = vmatpush1.msra.mxu0 0.0
    %1304 = vmatprep.subr.mxu0 0.0
    %1305 = vmatpush1.msra.mxu0 0.0
    %1306 = vmatprep.subr.mxu0 0.0
    %1307 = vmatpush1.msra.mxu0 0.0
    %1308 = vmatprep.subr.mxu0 0.0
    %1309 = vmatpush1.msra.mxu0 0.0
    %1310 = vmatprep.subr.mxu0 0.0
    %1311 = vmatpush1.msra.mxu0 0.0
    %1312 = vmatprep.subr.mxu0 0.0
    %1313 = vmatpush1.msra.mxu0 0.0
    %1314 = vmatprep.subr.mxu0 0.0
    %1315 = vmatpush1.msra.mxu0 0.0
    %1316 = vmatprep.subr.mxu0 0.0
    %1317 = vmatpush1.msra.mxu0 0.0
    %1318 = vmatprep.subr.mxu0 0.0
    %1319 = vmatpush1.msra.mxu0 0.0
    %1320 = vmatprep.subr.mxu0 0.0
    %1321 = vmatpush1.msra.mxu0 0.0
    %1322 = vmatprep.subr.mxu0 0.0
    %1323 = vmatpush1.msra.mxu0 0.0
    %1324 = vmatprep.subr.mxu0 0.0
    %1325 = vmatpush1.msra.mxu0 0.0
    %1326 = vmatprep.subr.mxu0 0.0
    %1327 = vmatpush1.msra.mxu0 0.0
    %1328 = vmatprep.subr.mxu0 0.0
    %1329 = vmatpush1.msra.mxu0 0.0
    %1330 = vmatprep.subr.mxu0 0.0
    %1331 = vmatpush1.msra.mxu0 0.0
    %1332 = vmatprep.subr.mxu0 0.0
    %1333 = vmatpush1.msra.mxu0 0.0
    %1334 = vmatprep.subr.mxu0 0.0
    %1335 = vmatpush1.msra.mxu0 0.0
    %1336 = vmatprep.mubr.f32.mxu0 0.0
    %1337 = vmatmul.mubr.f32.gmra.mrb[0].mxu0 %v1199
    %v1338 = vpop.f32.mrb[0].mxu0
    %v1339 = vadd.f32 %v1174, %v1338
    %v1340 = vpop.f32.mrb[0].mxu0
    %v1341 = vadd.f32 %v1178, %v1340
    %1342 = vdwg.mxu0
    %v1343 = vmax.f32 %v1268, 0.0
    %v1344 = vmax.f32 %v1270, 0.0
    %v1345 = vmax.f32 %v1339, 0.0
    %v1346 = vmax.f32 %v1341, 0.0
    %v1347 = vld [vmem:[#allocation2] sm:$0xff]
    %v1348 = vld [vmem:[#allocation2 + $0x8] sm:$0xff]
    %v1349 = vld [vmem:[#allocation2 + $0x10] sm:$0xff]
    %v1350 = vld [vmem:[#allocation2 + $0x18] sm:$0xff]
    %v1351 = vld [vmem:[#allocation2 + $0x20] sm:$0xff]
    %v1352 = vld [vmem:[#allocation2 + $0x28] sm:$0xff]
    %v1353 = vld [vmem:[#allocation2 + $0x30] sm:$0xff]
    %v1354 = vld [vmem:[#allocation2 + $0x38] sm:$0xff]
    %v1355 = vld [vmem:[#allocation2 + $0x40] sm:$0xff]
    %v1356 = vld [vmem:[#allocation2 + $0x48] sm:$0xff]
    %v1357 = vld [vmem:[#allocation2 + $0x50] sm:$0xff]
    %v1358 = vld [vmem:[#allocation2 + $0x58] sm:$0xff]
    %v1359 = vld [vmem:[#allocation2 + $0x60] sm:$0xff]
    %v1360 = vld [vmem:[#allocation2 + $0x68] sm:$0xff]
    %v1361 = vld [vmem:[#allocation2 + $0x70] sm:$0xff]
    %v1362 = vld [vmem:[#allocation2 + $0x78] sm:$0xff]
    %v1363 = vld [vmem:[#allocation2 + $0x80] sm:$0xff]
    %v1364 = vld [vmem:[#allocation2 + $0x88] sm:$0xff]
    %v1365 = vld [vmem:[#allocation2 + $0x90] sm:$0xff]
    %v1366 = vld [vmem:[#allocation2 + $0x98] sm:$0xff]
    %v1367 = vld [vmem:[#allocation2 + $0xa0] sm:$0xff]
    %v1368 = vld [vmem:[#allocation2 + $0xa8] sm:$0xff]
    %v1369 = vld [vmem:[#allocation2 + $0xb0] sm:$0xff]
    %v1370 = vld [vmem:[#allocation2 + $0xb8] sm:$0xff]
    %v1371 = vld [vmem:[#allocation2 + $0xc0] sm:$0xff]
    %v1372 = vld [vmem:[#allocation2 + $0xc8] sm:$0xff]
    %v1373 = vld [vmem:[#allocation2 + $0xd0] sm:$0xff]
    %v1374 = vld [vmem:[#allocation2 + $0xd8] sm:$0xff]
    %v1375 = vld [vmem:[#allocation2 + $0xe0] sm:$0xff]
    %v1376 = vld [vmem:[#allocation2 + $0xe8] sm:$0xff]
    %v1377 = vld [vmem:[#allocation2 + $0xf0] sm:$0xff]
    %v1378 = vld [vmem:[#allocation2 + $0xf8] sm:$0xff]
    %v1379 = vld [vmem:[#allocation2 + $0x100] sm:$0xff]
    %v1380 = vld [vmem:[#allocation2 + $0x108] sm:$0xff]
    %v1381 = vld [vmem:[#allocation2 + $0x110] sm:$0xff]
    %v1382 = vld [vmem:[#allocation2 + $0x118] sm:$0xff]
    %v1383 = vld [vmem:[#allocation2 + $0x120] sm:$0xff]
    %v1384 = vld [vmem:[#allocation2 + $0x128] sm:$0xff]
    %v1385 = vld [vmem:[#allocation2 + $0x130] sm:$0xff]
    %v1386 = vld [vmem:[#allocation2 + $0x138] sm:$0xff]
    %v1387 = vld [vmem:[#allocation2 + $0x140] sm:$0xff]
    %v1388 = vld [vmem:[#allocation2 + $0x148] sm:$0xff]
    %v1389 = vld [vmem:[#allocation2 + $0x150] sm:$0xff]
    %v1390 = vld [vmem:[#allocation2 + $0x158] sm:$0xff]
    %v1391 = vld [vmem:[#allocation2 + $0x160] sm:$0xff]
    %v1392 = vld [vmem:[#allocation2 + $0x168] sm:$0xff]
    %v1393 = vld [vmem:[#allocation2 + $0x170] sm:$0xff]
    %v1394 = vld [vmem:[#allocation2 + $0x178] sm:$0xff]
    %v1395 = vld [vmem:[#allocation2 + $0x180] sm:$0xff]
    %v1396 = vld [vmem:[#allocation2 + $0x188] sm:$0xff]
    %v1397 = vld [vmem:[#allocation2 + $0x190] sm:$0xff]
    %v1398 = vld [vmem:[#allocation2 + $0x198] sm:$0xff]
    %v1399 = vld [vmem:[#allocation2 + $0x1a0] sm:$0xff]
    %v1400 = vld [vmem:[#allocation2 + $0x1a8] sm:$0xff]
    %v1401 = vld [vmem:[#allocation2 + $0x1b0] sm:$0xff]
    %v1402 = vld [vmem:[#allocation2 + $0x1b8] sm:$0xff]
    %v1403 = vld [vmem:[#allocation2 + $0x1c0] sm:$0xff]
    %v1404 = vld [vmem:[#allocation2 + $0x1c8] sm:$0xff]
    %v1405 = vld [vmem:[#allocation2 + $0x1d0] sm:$0xff]
    %v1406 = vld [vmem:[#allocation2 + $0x1d8] sm:$0xff]
    %v1407 = vld [vmem:[#allocation2 + $0x1e0] sm:$0xff]
    %v1408 = vld [vmem:[#allocation2 + $0x1e8] sm:$0xff]
    %v1409 = vld [vmem:[#allocation2 + $0x1f0] sm:$0xff]
    %v1410 = vld [vmem:[#allocation2 + $0x1f8] sm:$0xff]
    %v1411 = vld [vmem:[#allocation2 + $0x200] sm:$0xff]
    %v1412 = vld [vmem:[#allocation2 + $0x208] sm:$0xff]
    %v1413 = vld [vmem:[#allocation2 + $0x210] sm:$0xff]
    %v1414 = vld [vmem:[#allocation2 + $0x218] sm:$0xff]
    %v1415 = vld [vmem:[#allocation2 + $0x220] sm:$0xff]
    %v1416 = vld [vmem:[#allocation2 + $0x228] sm:$0xff]
    %v1417 = vld [vmem:[#allocation2 + $0x230] sm:$0xff]
    %v1418 = vld [vmem:[#allocation2 + $0x238] sm:$0xff]
    %v1419 = vld [vmem:[#allocation2 + $0x240] sm:$0xff]
    %v1420 = vld [vmem:[#allocation2 + $0x248] sm:$0xff]
    %v1421 = vld [vmem:[#allocation2 + $0x250] sm:$0xff]
    %v1422 = vld [vmem:[#allocation2 + $0x258] sm:$0xff]
    %v1423 = vld [vmem:[#allocation2 + $0x260] sm:$0xff]
    %v1424 = vld [vmem:[#allocation2 + $0x268] sm:$0xff]
    %v1425 = vld [vmem:[#allocation2 + $0x270] sm:$0xff]
    %v1426 = vld [vmem:[#allocation2 + $0x278] sm:$0xff]
    %v1427 = vld [vmem:[#allocation2 + $0x280] sm:$0xff]
    %v1428 = vld [vmem:[#allocation2 + $0x288] sm:$0xff]
    %v1429 = vld [vmem:[#allocation2 + $0x290] sm:$0xff]
    %v1430 = vld [vmem:[#allocation2 + $0x298] sm:$0xff]
    %v1431 = vld [vmem:[#allocation2 + $0x2a0] sm:$0xff]
    %v1432 = vld [vmem:[#allocation2 + $0x2a8] sm:$0xff]
    %v1433 = vld [vmem:[#allocation2 + $0x2b0] sm:$0xff]
    %v1434 = vld [vmem:[#allocation2 + $0x2b8] sm:$0xff]
    %v1435 = vld [vmem:[#allocation2 + $0x2c0] sm:$0xff]
    %v1436 = vld [vmem:[#allocation2 + $0x2c8] sm:$0xff]
    %v1437 = vld [vmem:[#allocation2 + $0x2d0] sm:$0xff]
    %v1438 = vld [vmem:[#allocation2 + $0x2d8] sm:$0xff]
    %v1439 = vld [vmem:[#allocation2 + $0x2e0] sm:$0xff]
    %v1440 = vld [vmem:[#allocation2 + $0x2e8] sm:$0xff]
    %v1441 = vld [vmem:[#allocation2 + $0x2f0] sm:$0xff]
    %v1442 = vld [vmem:[#allocation2 + $0x2f8] sm:$0xff]
    %v1443 = vld [vmem:[#allocation2 + $0x300] sm:$0xff]
    %v1444 = vld [vmem:[#allocation2 + $0x308] sm:$0xff]
    %v1445 = vld [vmem:[#allocation2 + $0x310] sm:$0xff]
    %v1446 = vld [vmem:[#allocation2 + $0x318] sm:$0xff]
    %v1447 = vld [vmem:[#allocation2 + $0x320] sm:$0xff]
    %v1448 = vld [vmem:[#allocation2 + $0x328] sm:$0xff]
    %v1449 = vld [vmem:[#allocation2 + $0x330] sm:$0xff]
    %v1450 = vld [vmem:[#allocation2 + $0x338] sm:$0xff]
    %v1451 = vld [vmem:[#allocation2 + $0x340] sm:$0xff]
    %v1452 = vld [vmem:[#allocation2 + $0x348] sm:$0xff]
    %v1453 = vld [vmem:[#allocation2 + $0x350] sm:$0xff]
    %v1454 = vld [vmem:[#allocation2 + $0x358] sm:$0xff]
    %v1455 = vld [vmem:[#allocation2 + $0x360] sm:$0xff]
    %v1456 = vld [vmem:[#allocation2 + $0x368] sm:$0xff]
    %v1457 = vld [vmem:[#allocation2 + $0x370] sm:$0xff]
    %v1458 = vld [vmem:[#allocation2 + $0x378] sm:$0xff]
    %v1459 = vld [vmem:[#allocation2 + $0x380] sm:$0xff]
    %v1460 = vld [vmem:[#allocation2 + $0x388] sm:$0xff]
    %v1461 = vld [vmem:[#allocation2 + $0x390] sm:$0xff]
    %v1462 = vld [vmem:[#allocation2 + $0x398] sm:$0xff]
    %v1463 = vld [vmem:[#allocation2 + $0x3a0] sm:$0xff]
    %v1464 = vld [vmem:[#allocation2 + $0x3a8] sm:$0xff]
    %v1465 = vld [vmem:[#allocation2 + $0x3b0] sm:$0xff]
    %v1466 = vld [vmem:[#allocation2 + $0x3b8] sm:$0xff]
    %v1467 = vld [vmem:[#allocation2 + $0x3c0] sm:$0xff]
    %v1468 = vld [vmem:[#allocation2 + $0x3c8] sm:$0xff]
    %v1469 = vld [vmem:[#allocation2 + $0x3d0] sm:$0xff]
    %v1470 = vld [vmem:[#allocation2 + $0x3d8] sm:$0xff]
    %v1471 = vld [vmem:[#allocation2 + $0x3e0] sm:$0xff]
    %v1472 = vld [vmem:[#allocation2 + $0x3e8] sm:$0xff]
    %v1473 = vld [vmem:[#allocation2 + $0x3f0] sm:$0xff]
    %v1474 = vld [vmem:[#allocation2 + $0x3f8] sm:$0xff]
    %v1475 = vld [vmem:[#allocation2 + $0x400] sm:$0xff]
    %v1476 = vld [vmem:[#allocation2 + $0x408] sm:$0xff]
    %v1477 = vld [vmem:[#allocation2 + $0x410] sm:$0xff]
    %v1478 = vld [vmem:[#allocation2 + $0x418] sm:$0xff]
    %v1479 = vld [vmem:[#allocation2 + $0x420] sm:$0xff]
    %v1480 = vld [vmem:[#allocation2 + $0x428] sm:$0xff]
    %v1481 = vld [vmem:[#allocation2 + $0x430] sm:$0xff]
    %v1482 = vld [vmem:[#allocation2 + $0x438] sm:$0xff]
    %v1483 = vld [vmem:[#allocation2 + $0x440] sm:$0xff]
    %v1484 = vld [vmem:[#allocation2 + $0x448] sm:$0xff]
    %v1485 = vld [vmem:[#allocation2 + $0x450] sm:$0xff]
    %v1486 = vld [vmem:[#allocation2 + $0x458] sm:$0xff]
    %v1487 = vld [vmem:[#allocation2 + $0x460] sm:$0xff]
    %v1488 = vld [vmem:[#allocation2 + $0x468] sm:$0xff]
    %v1489 = vld [vmem:[#allocation2 + $0x470] sm:$0xff]
    %v1490 = vld [vmem:[#allocation2 + $0x478] sm:$0xff]
    %v1491 = vld [vmem:[#allocation2 + $0x480] sm:$0xff]
    %v1492 = vld [vmem:[#allocation2 + $0x488] sm:$0xff]
    %v1493 = vld [vmem:[#allocation2 + $0x490] sm:$0xff]
    %v1494 = vld [vmem:[#allocation2 + $0x498] sm:$0xff]
    %v1495 = vld [vmem:[#allocation2 + $0x4a0] sm:$0xff]
    %v1496 = vld [vmem:[#allocation2 + $0x4a8] sm:$0xff]
    %v1497 = vld [vmem:[#allocation2 + $0x4b0] sm:$0xff]
    %v1498 = vld [vmem:[#allocation2 + $0x4b8] sm:$0xff]
    %v1499 = vld [vmem:[#allocation2 + $0x4c0] sm:$0xff]
    %v1500 = vld [vmem:[#allocation2 + $0x4c8] sm:$0xff]
    %v1501 = vld [vmem:[#allocation2 + $0x4d0] sm:$0xff]
    %v1502 = vld [vmem:[#allocation2 + $0x4d8] sm:$0xff]
    %v1503 = vld [vmem:[#allocation2 + $0x4e0] sm:$0xff]
    %v1504 = vld [vmem:[#allocation2 + $0x4e8] sm:$0xff]
    %v1505 = vld [vmem:[#allocation2 + $0x4f0] sm:$0xff]
    %v1506 = vld [vmem:[#allocation2 + $0x4f8] sm:$0xff]
    %v1507 = vld [vmem:[#allocation2 + $0x500] sm:$0xff]
    %v1508 = vld [vmem:[#allocation2 + $0x508] sm:$0xff]
    %v1509 = vld [vmem:[#allocation2 + $0x510] sm:$0xff]
    %v1510 = vld [vmem:[#allocation2 + $0x518] sm:$0xff]
    %v1511 = vld [vmem:[#allocation2 + $0x520] sm:$0xff]
    %v1512 = vld [vmem:[#allocation2 + $0x528] sm:$0xff]
    %v1513 = vld [vmem:[#allocation2 + $0x530] sm:$0xff]
    %v1514 = vld [vmem:[#allocation2 + $0x538] sm:$0xff]
    %v1515 = vld [vmem:[#allocation2 + $0x540] sm:$0xff]
    %v1516 = vld [vmem:[#allocation2 + $0x548] sm:$0xff]
    %v1517 = vld [vmem:[#allocation2 + $0x550] sm:$0xff]
    %v1518 = vld [vmem:[#allocation2 + $0x558] sm:$0xff]
    %v1519 = vld [vmem:[#allocation2 + $0x560] sm:$0xff]
    %v1520 = vld [vmem:[#allocation2 + $0x568] sm:$0xff]
    %v1521 = vld [vmem:[#allocation2 + $0x570] sm:$0xff]
    %v1522 = vld [vmem:[#allocation2 + $0x578] sm:$0xff]
    %v1523 = vld [vmem:[#allocation2 + $0x580] sm:$0xff]
    %v1524 = vld [vmem:[#allocation2 + $0x588] sm:$0xff]
    %v1525 = vld [vmem:[#allocation2 + $0x590] sm:$0xff]
    %v1526 = vld [vmem:[#allocation2 + $0x598] sm:$0xff]
    %v1527 = vld [vmem:[#allocation2 + $0x5a0] sm:$0xff]
    %v1528 = vld [vmem:[#allocation2 + $0x5a8] sm:$0xff]
    %v1529 = vld [vmem:[#allocation2 + $0x5b0] sm:$0xff]
    %v1530 = vld [vmem:[#allocation2 + $0x5b8] sm:$0xff]
    %v1531 = vld [vmem:[#allocation2 + $0x5c0] sm:$0xff]
    %v1532 = vld [vmem:[#allocation2 + $0x5c8] sm:$0xff]
    %v1533 = vld [vmem:[#allocation2 + $0x5d0] sm:$0xff]
    %v1534 = vld [vmem:[#allocation2 + $0x5d8] sm:$0xff]
    %v1535 = vld [vmem:[#allocation2 + $0x5e0] sm:$0xff]
    %v1536 = vld [vmem:[#allocation2 + $0x5e8] sm:$0xff]
    %v1537 = vld [vmem:[#allocation2 + $0x5f0] sm:$0xff]
    %v1538 = vld [vmem:[#allocation2 + $0x5f8] sm:$0xff]
    %v1539 = vld [vmem:[#allocation2 + $0x600] sm:$0xff]
    %v1540 = vld [vmem:[#allocation2 + $0x608] sm:$0xff]
    %v1541 = vld [vmem:[#allocation2 + $0x610] sm:$0xff]
    %v1542 = vld [vmem:[#allocation2 + $0x618] sm:$0xff]
    %v1543 = vld [vmem:[#allocation2 + $0x620] sm:$0xff]
    %v1544 = vld [vmem:[#allocation2 + $0x628] sm:$0xff]
    %v1545 = vld [vmem:[#allocation2 + $0x630] sm:$0xff]
    %v1546 = vld [vmem:[#allocation2 + $0x638] sm:$0xff]
    %v1547 = vld [vmem:[#allocation2 + $0x640] sm:$0xff]
    %v1548 = vld [vmem:[#allocation2 + $0x648] sm:$0xff]
    %v1549 = vld [vmem:[#allocation2 + $0x650] sm:$0xff]
    %v1550 = vld [vmem:[#allocation2 + $0x658] sm:$0xff]
    %v1551 = vld [vmem:[#allocation2 + $0x660] sm:$0xff]
    %v1552 = vld [vmem:[#allocation2 + $0x668] sm:$0xff]
    %v1553 = vld [vmem:[#allocation2 + $0x670] sm:$0xff]
    %v1554 = vld [vmem:[#allocation2 + $0x678] sm:$0xff]
    %v1555 = vld [vmem:[#allocation2 + $0x680] sm:$0xff]
    %v1556 = vld [vmem:[#allocation2 + $0x688] sm:$0xff]
    %v1557 = vld [vmem:[#allocation2 + $0x690] sm:$0xff]
    %v1558 = vld [vmem:[#allocation2 + $0x698] sm:$0xff]
    %v1559 = vld [vmem:[#allocation2 + $0x6a0] sm:$0xff]
    %v1560 = vld [vmem:[#allocation2 + $0x6a8] sm:$0xff]
    %v1561 = vld [vmem:[#allocation2 + $0x6b0] sm:$0xff]
    %v1562 = vld [vmem:[#allocation2 + $0x6b8] sm:$0xff]
    %v1563 = vld [vmem:[#allocation2 + $0x6c0] sm:$0xff]
    %v1564 = vld [vmem:[#allocation2 + $0x6c8] sm:$0xff]
    %v1565 = vld [vmem:[#allocation2 + $0x6d0] sm:$0xff]
    %v1566 = vld [vmem:[#allocation2 + $0x6d8] sm:$0xff]
    %v1567 = vld [vmem:[#allocation2 + $0x6e0] sm:$0xff]
    %v1568 = vld [vmem:[#allocation2 + $0x6e8] sm:$0xff]
    %v1569 = vld [vmem:[#allocation2 + $0x6f0] sm:$0xff]
    %v1570 = vld [vmem:[#allocation2 + $0x6f8] sm:$0xff]
    %v1571 = vld [vmem:[#allocation2 + $0x700] sm:$0xff]
    %v1572 = vld [vmem:[#allocation2 + $0x708] sm:$0xff]
    %v1573 = vld [vmem:[#allocation2 + $0x710] sm:$0xff]
    %v1574 = vld [vmem:[#allocation2 + $0x718] sm:$0xff]
    %v1575 = vld [vmem:[#allocation2 + $0x720] sm:$0xff]
    %v1576 = vld [vmem:[#allocation2 + $0x728] sm:$0xff]
    %v1577 = vld [vmem:[#allocation2 + $0x730] sm:$0xff]
    %v1578 = vld [vmem:[#allocation2 + $0x738] sm:$0xff]
    %v1579 = vld [vmem:[#allocation2 + $0x740] sm:$0xff]
    %v1580 = vld [vmem:[#allocation2 + $0x748] sm:$0xff]
    %v1581 = vld [vmem:[#allocation2 + $0x750] sm:$0xff]
    %v1582 = vld [vmem:[#allocation2 + $0x758] sm:$0xff]
    %v1583 = vld [vmem:[#allocation2 + $0x760] sm:$0xff]
    %v1584 = vld [vmem:[#allocation2 + $0x768] sm:$0xff]
    %v1585 = vld [vmem:[#allocation2 + $0x770] sm:$0xff]
    %v1586 = vld [vmem:[#allocation2 + $0x778] sm:$0xff]
    %v1587 = vld [vmem:[#allocation2 + $0x780] sm:$0xff]
    %v1588 = vld [vmem:[#allocation2 + $0x788] sm:$0xff]
    %v1589 = vld [vmem:[#allocation2 + $0x790] sm:$0xff]
    %v1590 = vld [vmem:[#allocation2 + $0x798] sm:$0xff]
    %v1591 = vld [vmem:[#allocation2 + $0x7a0] sm:$0xff]
    %v1592 = vld [vmem:[#allocation2 + $0x7a8] sm:$0xff]
    %v1593 = vld [vmem:[#allocation2 + $0x7b0] sm:$0xff]
    %v1594 = vld [vmem:[#allocation2 + $0x7b8] sm:$0xff]
    %v1595 = vld [vmem:[#allocation2 + $0x7c0] sm:$0xff]
    %v1596 = vld [vmem:[#allocation2 + $0x7c8] sm:$0xff]
    %v1597 = vld [vmem:[#allocation2 + $0x7d0] sm:$0xff]
    %v1598 = vld [vmem:[#allocation2 + $0x7d8] sm:$0xff]
    %v1599 = vld [vmem:[#allocation2 + $0x7e0] sm:$0xff]
    %v1600 = vld [vmem:[#allocation2 + $0x7e8] sm:$0xff]
    %v1601 = vld [vmem:[#allocation2 + $0x7f0] sm:$0xff]
    %v1602 = vld [vmem:[#allocation2 + $0x7f8] sm:$0xff]
    %v1603 = vld [vmem:[%s6] sm:$0xf]
    %v1605 = vlaneseq
    %v1606 = vshrl.u32 %v1605, 7
    %v1607 = vsub.s32 0, %v1606
    %v1608 = vrot.slane %v1603, %v1607
    %v1609 = vlaneseq
    %v1610 = vshrl.u32 %v1609, 7
    %v1611 = vsub.s32 1, %v1610
    %v1612 = vrot.slane %v1603, %v1611
    %v1613 = vlaneseq
    %v1614 = vshrl.u32 %v1613, 7
    %v1615 = vsub.s32 2, %v1614
    %v1616 = vrot.slane %v1603, %v1615
    %v1617 = vlaneseq
    %v1618 = vshrl.u32 %v1617, 7
    %v1619 = vsub.s32 3, %v1618
    %v1620 = vrot.slane %v1603, %v1619
    %1625 = vmatprep.subr.mxu0 %v1348
    %1626 = vmatpush1.msra.mxu0 %v1347
    %1627 = vmatprep.subr.mxu0 %v1352
    %1628 = vmatpush1.msra.mxu0 %v1351
    %1629 = vmatprep.subr.mxu0 %v1356
    %1630 = vmatpush1.msra.mxu0 %v1355
    %1631 = vmatprep.subr.mxu0 %v1360
    %1632 = vmatpush1.msra.mxu0 %v1359
    %1633 = vmatprep.subr.mxu0 %v1364
    %1634 = vmatpush1.msra.mxu0 %v1363
    %1635 = vmatprep.subr.mxu0 %v1368
    %1636 = vmatpush1.msra.mxu0 %v1367
    %1637 = vmatprep.subr.mxu0 %v1372
    %1638 = vmatpush1.msra.mxu0 %v1371
    %1639 = vmatprep.subr.mxu0 %v1376
    %1640 = vmatpush1.msra.mxu0 %v1375
    %1641 = vmatprep.subr.mxu0 %v1380
    %1642 = vmatpush1.msra.mxu0 %v1379
    %1643 = vmatprep.subr.mxu0 %v1384
    %1644 = vmatpush1.msra.mxu0 %v1383
    %1645 = vmatprep.subr.mxu0 %v1388
    %1646 = vmatpush1.msra.mxu0 %v1387
    %1647 = vmatprep.subr.mxu0 %v1392
    %1648 = vmatpush1.msra.mxu0 %v1391
    %1649 = vmatprep.subr.mxu0 %v1396
    %1650 = vmatpush1.msra.mxu0 %v1395
    %1651 = vmatprep.subr.mxu0 %v1400
    %1652 = vmatpush1.msra.mxu0 %v1399
    %1653 = vmatprep.subr.mxu0 %v1404
    %1654 = vmatpush1.msra.mxu0 %v1403
    %1655 = vmatprep.subr.mxu0 %v1408
    %1656 = vmatpush1.msra.mxu0 %v1407
    %1657 = vmatprep.subr.mxu0 %v1412
    %1658 = vmatpush1.msra.mxu0 %v1411
    %1659 = vmatprep.subr.mxu0 %v1416
    %1660 = vmatpush1.msra.mxu0 %v1415
    %1661 = vmatprep.subr.mxu0 %v1420
    %1662 = vmatpush1.msra.mxu0 %v1419
    %1663 = vmatprep.subr.mxu0 %v1424
    %1664 = vmatpush1.msra.mxu0 %v1423
    %1665 = vmatprep.subr.mxu0 %v1428
    %1666 = vmatpush1.msra.mxu0 %v1427
    %1667 = vmatprep.subr.mxu0 %v1432
    %1668 = vmatpush1.msra.mxu0 %v1431
    %1669 = vmatprep.subr.mxu0 %v1436
    %1670 = vmatpush1.msra.mxu0 %v1435
    %1671 = vmatprep.subr.mxu0 %v1440
    %1672 = vmatpush1.msra.mxu0 %v1439
    %1673 = vmatprep.subr.mxu0 %v1444
    %1674 = vmatpush1.msra.mxu0 %v1443
    %1675 = vmatprep.subr.mxu0 %v1448
    %1676 = vmatpush1.msra.mxu0 %v1447
    %1677 = vmatprep.subr.mxu0 %v1452
    %1678 = vmatpush1.msra.mxu0 %v1451
    %1679 = vmatprep.subr.mxu0 %v1456
    %1680 = vmatpush1.msra.mxu0 %v1455
    %1681 = vmatprep.subr.mxu0 %v1460
    %1682 = vmatpush1.msra.mxu0 %v1459
    %1683 = vmatprep.subr.mxu0 %v1464
    %1684 = vmatpush1.msra.mxu0 %v1463
    %1685 = vmatprep.subr.mxu0 %v1468
    %1686 = vmatpush1.msra.mxu0 %v1467
    %1687 = vmatprep.subr.mxu0 %v1472
    %1688 = vmatpush1.msra.mxu0 %v1471
    %1689 = vmatprep.mubr.f32.mxu0 %v1344
    %1690 = vmatmul.mubr.f32.gmra.mrb[0].mxu0 %v1343
    %v1691 = vpop.f32.mrb[0].mxu0
    %v1692 = vadd.f32 %v1608, %v1691
    %v1693 = vpop.f32.mrb[0].mxu0
    %v1694 = vadd.f32 %v1612, %v1693
    %1695 = vdwg.mxu0
    %1696 = vmatprep.subr.mxu0 %v1476
    %1697 = vmatpush1.msra.mxu0 %v1475
    %1698 = vmatprep.subr.mxu0 %v1480
    %1699 = vmatpush1.msra.mxu0 %v1479
    %1700 = vmatprep.subr.mxu0 %v1484
    %1701 = vmatpush1.msra.mxu0 %v1483
    %1702 = vmatprep.subr.mxu0 %v1488
    %1703 = vmatpush1.msra.mxu0 %v1487
    %1704 = vmatprep.subr.mxu0 %v1492
    %1705 = vmatpush1.msra.mxu0 %v1491
    %1706 = vmatprep.subr.mxu0 %v1496
    %1707 = vmatpush1.msra.mxu0 %v1495
    %1708 = vmatprep.subr.mxu0 %v1500
    %1709 = vmatpush1.msra.mxu0 %v1499
    %1710 = vmatprep.subr.mxu0 %v1504
    %1711 = vmatpush1.msra.mxu0 %v1503
    %1712 = vmatprep.subr.mxu0 %v1508
    %1713 = vmatpush1.msra.mxu0 %v1507
    %1714 = vmatprep.subr.mxu0 %v1512
    %1715 = vmatpush1.msra.mxu0 %v1511
    %1716 = vmatprep.subr.mxu0 %v1516
    %1717 = vmatpush1.msra.mxu0 %v1515
    %1718 = vmatprep.subr.mxu0 %v1520
    %1719 = vmatpush1.msra.mxu0 %v1519
    %1720 = vmatprep.subr.mxu0 %v1524
    %1721 = vmatpush1.msra.mxu0 %v1523
    %1722 = vmatprep.subr.mxu0 %v1528
    %1723 = vmatpush1.msra.mxu0 %v1527
    %1724 = vmatprep.subr.mxu0 %v1532
    %1725 = vmatpush1.msra.mxu0 %v1531
    %1726 = vmatprep.subr.mxu0 %v1536
    %1727 = vmatpush1.msra.mxu0 %v1535
    %1728 = vmatprep.subr.mxu0 %v1540
    %1729 = vmatpush1.msra.mxu0 %v1539
    %1730 = vmatprep.subr.mxu0 %v1544
    %1731 = vmatpush1.msra.mxu0 %v1543
    %1732 = vmatprep.subr.mxu0 %v1548
    %1733 = vmatpush1.msra.mxu0 %v1547
    %1734 = vmatprep.subr.mxu0 %v1552
    %1735 = vmatpush1.msra.mxu0 %v1551
    %1736 = vmatprep.subr.mxu0 %v1556
    %1737 = vmatpush1.msra.mxu0 %v1555
    %1738 = vmatprep.subr.mxu0 %v1560
    %1739 = vmatpush1.msra.mxu0 %v1559
    %1740 = vmatprep.subr.mxu0 %v1564
    %1741 = vmatpush1.msra.mxu0 %v1563
    %1742 = vmatprep.subr.mxu0 %v1568
    %1743 = vmatpush1.msra.mxu0 %v1567
    %1744 = vmatprep.subr.mxu0 %v1572
    %1745 = vmatpush1.msra.mxu0 %v1571
    %1746 = vmatprep.subr.mxu0 %v1576
    %1747 = vmatpush1.msra.mxu0 %v1575
    %1748 = vmatprep.subr.mxu0 %v1580
    %1749 = vmatpush1.msra.mxu0 %v1579
    %1750 = vmatprep.subr.mxu0 %v1584
    %1751 = vmatpush1.msra.mxu0 %v1583
    %1752 = vmatprep.subr.mxu0 %v1588
    %1753 = vmatpush1.msra.mxu0 %v1587
    %1754 = vmatprep.subr.mxu0 %v1592
    %1755 = vmatpush1.msra.mxu0 %v1591
    %1756 = vmatprep.subr.mxu0 %v1596
    %1757 = vmatpush1.msra.mxu0 %v1595
    %1758 = vmatprep.subr.mxu0 %v1600
    %1759 = vmatpush1.msra.mxu0 %v1599
    %1760 = vmatprep.mubr.f32.mxu0 %v1346
    %1761 = vmatmul.mubr.f32.gmra.mrb[0].mxu0 %v1345
    %v1762 = vpop.f32.mrb[0].mxu0
    %v1763 = vadd.f32 %v1692, %v1762
    %v1764 = vpop.f32.mrb[0].mxu0
    %v1765 = vadd.f32 %v1694, %v1764
    %1766 = vdwg.mxu0
    %1767 = vmatprep.subr.mxu0 %v1350
    %1768 = vmatpush1.msra.mxu0 %v1349
    %1769 = vmatprep.subr.mxu0 %v1354
    %1770 = vmatpush1.msra.mxu0 %v1353
    %1771 = vmatprep.subr.mxu0 %v1358
    %1772 = vmatpush1.msra.mxu0 %v1357
    %1773 = vmatprep.subr.mxu0 %v1362
    %1774 = vmatpush1.msra.mxu0 %v1361
    %1775 = vmatprep.subr.mxu0 %v1366
    %1776 = vmatpush1.msra.mxu0 %v1365
    %1777 = vmatprep.subr.mxu0 %v1370
    %1778 = vmatpush1.msra.mxu0 %v1369
    %1779 = vmatprep.subr.mxu0 %v1374
    %1780 = vmatpush1.msra.mxu0 %v1373
    %1781 = vmatprep.subr.mxu0 %v1378
    %1782 = vmatpush1.msra.mxu0 %v1377
    %1783 = vmatprep.subr.mxu0 %v1382
    %1784 = vmatpush1.msra.mxu0 %v1381
    %1785 = vmatprep.subr.mxu0 %v1386
    %1786 = vmatpush1.msra.mxu0 %v1385
    %1787 = vmatprep.subr.mxu0 %v1390
    %1788 = vmatpush1.msra.mxu0 %v1389
    %1789 = vmatprep.subr.mxu0 %v1394
    %1790 = vmatpush1.msra.mxu0 %v1393
    %1791 = vmatprep.subr.mxu0 %v1398
    %1792 = vmatpush1.msra.mxu0 %v1397
    %1793 = vmatprep.subr.mxu0 %v1402
    %1794 = vmatpush1.msra.mxu0 %v1401
    %1795 = vmatprep.subr.mxu0 %v1406
    %1796 = vmatpush1.msra.mxu0 %v1405
    %1797 = vmatprep.subr.mxu0 %v1410
    %1798 = vmatpush1.msra.mxu0 %v1409
    %1799 = vmatprep.subr.mxu0 %v1414
    %1800 = vmatpush1.msra.mxu0 %v1413
    %1801 = vmatprep.subr.mxu0 %v1418
    %1802 = vmatpush1.msra.mxu0 %v1417
    %1803 = vmatprep.subr.mxu0 %v1422
    %1804 = vmatpush1.msra.mxu0 %v1421
    %1805 = vmatprep.subr.mxu0 %v1426
    %1806 = vmatpush1.msra.mxu0 %v1425
    %1807 = vmatprep.subr.mxu0 %v1430
    %1808 = vmatpush1.msra.mxu0 %v1429
    %1809 = vmatprep.subr.mxu0 %v1434
    %1810 = vmatpush1.msra.mxu0 %v1433
    %1811 = vmatprep.subr.mxu0 %v1438
    %1812 = vmatpush1.msra.mxu0 %v1437
    %1813 = vmatprep.subr.mxu0 %v1442
    %1814 = vmatpush1.msra.mxu0 %v1441
    %1815 = vmatprep.subr.mxu0 %v1446
    %1816 = vmatpush1.msra.mxu0 %v1445
    %1817 = vmatprep.subr.mxu0 %v1450
    %1818 = vmatpush1.msra.mxu0 %v1449
    %1819 = vmatprep.subr.mxu0 %v1454
    %1820 = vmatpush1.msra.mxu0 %v1453
    %1821 = vmatprep.subr.mxu0 %v1458
    %1822 = vmatpush1.msra.mxu0 %v1457
    %1823 = vmatprep.subr.mxu0 %v1462
    %1824 = vmatpush1.msra.mxu0 %v1461
    %1825 = vmatprep.subr.mxu0 %v1466
    %1826 = vmatpush1.msra.mxu0 %v1465
    %1827 = vmatprep.subr.mxu0 %v1470
    %1828 = vmatpush1.msra.mxu0 %v1469
    %1829 = vmatprep.subr.mxu0 %v1474
    %1830 = vmatpush1.msra.mxu0 %v1473
    %1831 = vmatprep.mubr.f32.mxu0 %v1344
    %1832 = vmatmul.mubr.f32.gmra.mrb[0].mxu0 %v1343
    %v1833 = vpop.f32.mrb[0].mxu0
    %v1834 = vadd.f32 %v1616, %v1833
    %v1835 = vpop.f32.mrb[0].mxu0
    %v1836 = vadd.f32 %v1620, %v1835
    %1837 = vdwg.mxu0
    %1838 = vmatprep.subr.mxu0 %v1478
    %1839 = vmatpush1.msra.mxu0 %v1477
    %1840 = vmatprep.subr.mxu0 %v1482
    %1841 = vmatpush1.msra.mxu0 %v1481
    %1842 = vmatprep.subr.mxu0 %v1486
    %1843 = vmatpush1.msra.mxu0 %v1485
    %1844 = vmatprep.subr.mxu0 %v1490
    %1845 = vmatpush1.msra.mxu0 %v1489
    %1846 = vmatprep.subr.mxu0 %v1494
    %1847 = vmatpush1.msra.mxu0 %v1493
    %1848 = vmatprep.subr.mxu0 %v1498
    %1849 = vmatpush1.msra.mxu0 %v1497
    %1850 = vmatprep.subr.mxu0 %v1502
    %1851 = vmatpush1.msra.mxu0 %v1501
    %1852 = vmatprep.subr.mxu0 %v1506
    %1853 = vmatpush1.msra.mxu0 %v1505
    %1854 = vmatprep.subr.mxu0 %v1510
    %1855 = vmatpush1.msra.mxu0 %v1509
    %1856 = vmatprep.subr.mxu0 %v1514
    %1857 = vmatpush1.msra.mxu0 %v1513
    %1858 = vmatprep.subr.mxu0 %v1518
    %1859 = vmatpush1.msra.mxu0 %v1517
    %1860 = vmatprep.subr.mxu0 %v1522
    %1861 = vmatpush1.msra.mxu0 %v1521
    %1862 = vmatprep.subr.mxu0 %v1526
    %1863 = vmatpush1.msra.mxu0 %v1525
    %1864 = vmatprep.subr.mxu0 %v1530
    %1865 = vmatpush1.msra.mxu0 %v1529
    %1866 = vmatprep.subr.mxu0 %v1534
    %1867 = vmatpush1.msra.mxu0 %v1533
    %1868 = vmatprep.subr.mxu0 %v1538
    %1869 = vmatpush1.msra.mxu0 %v1537
    %1870 = vmatprep.subr.mxu0 %v1542
    %1871 = vmatpush1.msra.mxu0 %v1541
    %1872 = vmatprep.subr.mxu0 %v1546
    %1873 = vmatpush1.msra.mxu0 %v1545
    %1874 = vmatprep.subr.mxu0 %v1550
    %1875 = vmatpush1.msra.mxu0 %v1549
    %1876 = vmatprep.subr.mxu0 %v1554
    %1877 = vmatpush1.msra.mxu0 %v1553
    %1878 = vmatprep.subr.mxu0 %v1558
    %1879 = vmatpush1.msra.mxu0 %v1557
    %1880 = vmatprep.subr.mxu0 %v1562
    %1881 = vmatpush1.msra.mxu0 %v1561
    %1882 = vmatprep.subr.mxu0 %v1566
    %1883 = vmatpush1.msra.mxu0 %v1565
    %1884 = vmatprep.subr.mxu0 %v1570
    %1885 = vmatpush1.msra.mxu0 %v1569
    %1886 = vmatprep.subr.mxu0 %v1574
    %1887 = vmatpush1.msra.mxu0 %v1573
    %1888 = vmatprep.subr.mxu0 %v1578
    %1889 = vmatpush1.msra.mxu0 %v1577
    %1890 = vmatprep.subr.mxu0 %v1582
    %1891 = vmatpush1.msra.mxu0 %v1581
    %1892 = vmatprep.subr.mxu0 %v1586
    %1893 = vmatpush1.msra.mxu0 %v1585
    %1894 = vmatprep.subr.mxu0 %v1590
    %1895 = vmatpush1.msra.mxu0 %v1589
    %1896 = vmatprep.subr.mxu0 %v1594
    %1897 = vmatpush1.msra.mxu0 %v1593
    %1898 = vmatprep.subr.mxu0 %v1598
    %1899 = vmatpush1.msra.mxu0 %v1597
    %1900 = vmatprep.subr.mxu0 %v1602
    %1901 = vmatpush1.msra.mxu0 %v1601
    %1902 = vmatprep.mubr.f32.mxu0 %v1346
    %1903 = vmatmul.mubr.f32.gmra.mrb[0].mxu0 %v1345
    %v1904 = vpop.f32.mrb[0].mxu0
    %v1905 = vadd.f32 %v1834, %v1904
    %v1906 = vpop.f32.mrb[0].mxu0
    %v1907 = vadd.f32 %v1836, %v1906
    %1908 = vdwg.mxu0
    %v1909 = vmax.f32 %v1763, 0.0
    %v1910 = vmax.f32 %v1765, 0.0
    %v1911 = vmax.f32 %v1905, 0.0
    %v1912 = vmax.f32 %v1907, 0.0
    %v1913 = vld [vmem:[#allocation5] sm:$0xff]
    %v1914 = vld [vmem:[#allocation5 + $0x8] sm:$0xff]
    %v1915 = vld [vmem:[#allocation5 + $0x10] sm:$0xff]
    %v1916 = vld [vmem:[#allocation5 + $0x18] sm:$0xff]
    %v1917 = vld [vmem:[#allocation5 + $0x20] sm:$0xff]
    %v1918 = vld [vmem:[#allocation5 + $0x28] sm:$0xff]
    %v1919 = vld [vmem:[#allocation5 + $0x30] sm:$0xff]
    %v1920 = vld [vmem:[#allocation5 + $0x38] sm:$0xff]
    %v1921 = vld [vmem:[#allocation5 + $0x40] sm:$0xff]
    %v1922 = vld [vmem:[#allocation5 + $0x48] sm:$0xff]
    %v1923 = vld [vmem:[#allocation5 + $0x50] sm:$0xff]
    %v1924 = vld [vmem:[#allocation5 + $0x58] sm:$0xff]
    %v1925 = vld [vmem:[#allocation5 + $0x60] sm:$0xff]
    %v1926 = vld [vmem:[#allocation5 + $0x68] sm:$0xff]
    %v1927 = vld [vmem:[#allocation5 + $0x70] sm:$0xff]
    %v1928 = vld [vmem:[#allocation5 + $0x78] sm:$0xff]
    %v1929 = vld [vmem:[#allocation5 + $0x80] sm:$0xff]
    %v1930 = vld [vmem:[#allocation5 + $0x88] sm:$0xff]
    %v1931 = vld [vmem:[#allocation5 + $0x90] sm:$0xff]
    %v1932 = vld [vmem:[#allocation5 + $0x98] sm:$0xff]
    %v1933 = vld [vmem:[#allocation5 + $0xa0] sm:$0xff]
    %v1934 = vld [vmem:[#allocation5 + $0xa8] sm:$0xff]
    %v1935 = vld [vmem:[#allocation5 + $0xb0] sm:$0xff]
    %v1936 = vld [vmem:[#allocation5 + $0xb8] sm:$0xff]
    %v1937 = vld [vmem:[#allocation5 + $0xc0] sm:$0xff]
    %v1938 = vld [vmem:[#allocation5 + $0xc8] sm:$0xff]
    %v1939 = vld [vmem:[#allocation5 + $0xd0] sm:$0xff]
    %v1940 = vld [vmem:[#allocation5 + $0xd8] sm:$0xff]
    %v1941 = vld [vmem:[#allocation5 + $0xe0] sm:$0xff]
    %v1942 = vld [vmem:[#allocation5 + $0xe8] sm:$0xff]
    %v1943 = vld [vmem:[#allocation5 + $0xf0] sm:$0xff]
    %v1944 = vld [vmem:[#allocation5 + $0xf8] sm:$0xff]
    %v1945 = vld [vmem:[#allocation5 + $0x100] sm:$0xff]
    %v1946 = vld [vmem:[#allocation5 + $0x108] sm:$0xff]
    %v1947 = vld [vmem:[#allocation5 + $0x110] sm:$0xff]
    %v1948 = vld [vmem:[#allocation5 + $0x118] sm:$0xff]
    %v1949 = vld [vmem:[#allocation5 + $0x120] sm:$0xff]
    %v1950 = vld [vmem:[#allocation5 + $0x128] sm:$0xff]
    %v1951 = vld [vmem:[#allocation5 + $0x130] sm:$0xff]
    %v1952 = vld [vmem:[#allocation5 + $0x138] sm:$0xff]
    %v1953 = vld [vmem:[#allocation5 + $0x140] sm:$0xff]
    %v1954 = vld [vmem:[#allocation5 + $0x148] sm:$0xff]
    %v1955 = vld [vmem:[#allocation5 + $0x150] sm:$0xff]
    %v1956 = vld [vmem:[#allocation5 + $0x158] sm:$0xff]
    %v1957 = vld [vmem:[#allocation5 + $0x160] sm:$0xff]
    %v1958 = vld [vmem:[#allocation5 + $0x168] sm:$0xff]
    %v1959 = vld [vmem:[#allocation5 + $0x170] sm:$0xff]
    %v1960 = vld [vmem:[#allocation5 + $0x178] sm:$0xff]
    %v1961 = vld [vmem:[#allocation5 + $0x180] sm:$0xff]
    %v1962 = vld [vmem:[#allocation5 + $0x188] sm:$0xff]
    %v1963 = vld [vmem:[#allocation5 + $0x190] sm:$0xff]
    %v1964 = vld [vmem:[#allocation5 + $0x198] sm:$0xff]
    %v1965 = vld [vmem:[#allocation5 + $0x1a0] sm:$0xff]
    %v1966 = vld [vmem:[#allocation5 + $0x1a8] sm:$0xff]
    %v1967 = vld [vmem:[#allocation5 + $0x1b0] sm:$0xff]
    %v1968 = vld [vmem:[#allocation5 + $0x1b8] sm:$0xff]
    %v1969 = vld [vmem:[#allocation5 + $0x1c0] sm:$0xff]
    %v1970 = vld [vmem:[#allocation5 + $0x1c8] sm:$0xff]
    %v1971 = vld [vmem:[#allocation5 + $0x1d0] sm:$0xff]
    %v1972 = vld [vmem:[#allocation5 + $0x1d8] sm:$0xff]
    %v1973 = vld [vmem:[#allocation5 + $0x1e0] sm:$0xff]
    %v1974 = vld [vmem:[#allocation5 + $0x1e8] sm:$0xff]
    %v1975 = vld [vmem:[#allocation5 + $0x1f0] sm:$0xff]
    %v1976 = vld [vmem:[#allocation5 + $0x1f8] sm:$0xff]
    %v1977 = vld [vmem:[#allocation5 + $0x200] sm:$0xff]
    %v1978 = vld [vmem:[#allocation5 + $0x208] sm:$0xff]
    %v1979 = vld [vmem:[#allocation5 + $0x210] sm:$0xff]
    %v1980 = vld [vmem:[#allocation5 + $0x218] sm:$0xff]
    %v1981 = vld [vmem:[#allocation5 + $0x220] sm:$0xff]
    %v1982 = vld [vmem:[#allocation5 + $0x228] sm:$0xff]
    %v1983 = vld [vmem:[#allocation5 + $0x230] sm:$0xff]
    %v1984 = vld [vmem:[#allocation5 + $0x238] sm:$0xff]
    %v1985 = vld [vmem:[#allocation5 + $0x240] sm:$0xff]
    %v1986 = vld [vmem:[#allocation5 + $0x248] sm:$0xff]
    %v1987 = vld [vmem:[#allocation5 + $0x250] sm:$0xff]
    %v1988 = vld [vmem:[#allocation5 + $0x258] sm:$0xff]
    %v1989 = vld [vmem:[#allocation5 + $0x260] sm:$0xff]
    %v1990 = vld [vmem:[#allocation5 + $0x268] sm:$0xff]
    %v1991 = vld [vmem:[#allocation5 + $0x270] sm:$0xff]
    %v1992 = vld [vmem:[#allocation5 + $0x278] sm:$0xff]
    %v1993 = vld [vmem:[#allocation5 + $0x280] sm:$0xff]
    %v1994 = vld [vmem:[#allocation5 + $0x288] sm:$0xff]
    %v1995 = vld [vmem:[#allocation5 + $0x290] sm:$0xff]
    %v1996 = vld [vmem:[#allocation5 + $0x298] sm:$0xff]
    %v1997 = vld [vmem:[#allocation5 + $0x2a0] sm:$0xff]
    %v1998 = vld [vmem:[#allocation5 + $0x2a8] sm:$0xff]
    %v1999 = vld [vmem:[#allocation5 + $0x2b0] sm:$0xff]
    %v2000 = vld [vmem:[#allocation5 + $0x2b8] sm:$0xff]
    %v2001 = vld [vmem:[#allocation5 + $0x2c0] sm:$0xff]
    %v2002 = vld [vmem:[#allocation5 + $0x2c8] sm:$0xff]
    %v2003 = vld [vmem:[#allocation5 + $0x2d0] sm:$0xff]
    %v2004 = vld [vmem:[#allocation5 + $0x2d8] sm:$0xff]
    %v2005 = vld [vmem:[#allocation5 + $0x2e0] sm:$0xff]
    %v2006 = vld [vmem:[#allocation5 + $0x2e8] sm:$0xff]
    %v2007 = vld [vmem:[#allocation5 + $0x2f0] sm:$0xff]
    %v2008 = vld [vmem:[#allocation5 + $0x2f8] sm:$0xff]
    %v2009 = vld [vmem:[#allocation5 + $0x300] sm:$0xff]
    %v2010 = vld [vmem:[#allocation5 + $0x308] sm:$0xff]
    %v2011 = vld [vmem:[#allocation5 + $0x310] sm:$0xff]
    %v2012 = vld [vmem:[#allocation5 + $0x318] sm:$0xff]
    %v2013 = vld [vmem:[#allocation5 + $0x320] sm:$0xff]
    %v2014 = vld [vmem:[#allocation5 + $0x328] sm:$0xff]
    %v2015 = vld [vmem:[#allocation5 + $0x330] sm:$0xff]
    %v2016 = vld [vmem:[#allocation5 + $0x338] sm:$0xff]
    %v2017 = vld [vmem:[#allocation5 + $0x340] sm:$0xff]
    %v2018 = vld [vmem:[#allocation5 + $0x348] sm:$0xff]
    %v2019 = vld [vmem:[#allocation5 + $0x350] sm:$0xff]
    %v2020 = vld [vmem:[#allocation5 + $0x358] sm:$0xff]
    %v2021 = vld [vmem:[#allocation5 + $0x360] sm:$0xff]
    %v2022 = vld [vmem:[#allocation5 + $0x368] sm:$0xff]
    %v2023 = vld [vmem:[#allocation5 + $0x370] sm:$0xff]
    %v2024 = vld [vmem:[#allocation5 + $0x378] sm:$0xff]
    %v2025 = vld [vmem:[#allocation5 + $0x380] sm:$0xff]
    %v2026 = vld [vmem:[#allocation5 + $0x388] sm:$0xff]
    %v2027 = vld [vmem:[#allocation5 + $0x390] sm:$0xff]
    %v2028 = vld [vmem:[#allocation5 + $0x398] sm:$0xff]
    %v2029 = vld [vmem:[#allocation5 + $0x3a0] sm:$0xff]
    %v2030 = vld [vmem:[#allocation5 + $0x3a8] sm:$0xff]
    %v2031 = vld [vmem:[#allocation5 + $0x3b0] sm:$0xff]
    %v2032 = vld [vmem:[#allocation5 + $0x3b8] sm:$0xff]
    %v2033 = vld [vmem:[#allocation5 + $0x3c0] sm:$0xff]
    %v2034 = vld [vmem:[#allocation5 + $0x3c8] sm:$0xff]
    %v2035 = vld [vmem:[#allocation5 + $0x3d0] sm:$0xff]
    %v2036 = vld [vmem:[#allocation5 + $0x3d8] sm:$0xff]
    %v2037 = vld [vmem:[#allocation5 + $0x3e0] sm:$0xff]
    %v2038 = vld [vmem:[#allocation5 + $0x3e8] sm:$0xff]
    %v2039 = vld [vmem:[#allocation5 + $0x3f0] sm:$0xff]
    %v2040 = vld [vmem:[#allocation5 + $0x3f8] sm:$0xff]
    %v2041 = vld [vmem:[#allocation5 + $0x400] sm:$0xff]
    %v2042 = vld [vmem:[#allocation5 + $0x408] sm:$0xff]
    %v2043 = vld [vmem:[#allocation5 + $0x410] sm:$0xff]
    %v2044 = vld [vmem:[#allocation5 + $0x418] sm:$0xff]
    %v2045 = vld [vmem:[#allocation5 + $0x420] sm:$0xff]
    %v2046 = vld [vmem:[#allocation5 + $0x428] sm:$0xff]
    %v2047 = vld [vmem:[#allocation5 + $0x430] sm:$0xff]
    %v2048 = vld [vmem:[#allocation5 + $0x438] sm:$0xff]
    %v2049 = vld [vmem:[#allocation5 + $0x440] sm:$0xff]
    %v2050 = vld [vmem:[#allocation5 + $0x448] sm:$0xff]
    %v2051 = vld [vmem:[#allocation5 + $0x450] sm:$0xff]
    %v2052 = vld [vmem:[#allocation5 + $0x458] sm:$0xff]
    %v2053 = vld [vmem:[#allocation5 + $0x460] sm:$0xff]
    %v2054 = vld [vmem:[#allocation5 + $0x468] sm:$0xff]
    %v2055 = vld [vmem:[#allocation5 + $0x470] sm:$0xff]
    %v2056 = vld [vmem:[#allocation5 + $0x478] sm:$0xff]
    %v2057 = vld [vmem:[#allocation5 + $0x480] sm:$0xff]
    %v2058 = vld [vmem:[#allocation5 + $0x488] sm:$0xff]
    %v2059 = vld [vmem:[#allocation5 + $0x490] sm:$0xff]
    %v2060 = vld [vmem:[#allocation5 + $0x498] sm:$0xff]
    %v2061 = vld [vmem:[#allocation5 + $0x4a0] sm:$0xff]
    %v2062 = vld [vmem:[#allocation5 + $0x4a8] sm:$0xff]
    %v2063 = vld [vmem:[#allocation5 + $0x4b0] sm:$0xff]
    %v2064 = vld [vmem:[#allocation5 + $0x4b8] sm:$0xff]
    %v2065 = vld [vmem:[#allocation5 + $0x4c0] sm:$0xff]
    %v2066 = vld [vmem:[#allocation5 + $0x4c8] sm:$0xff]
    %v2067 = vld [vmem:[#allocation5 + $0x4d0] sm:$0xff]
    %v2068 = vld [vmem:[#allocation5 + $0x4d8] sm:$0xff]
    %v2069 = vld [vmem:[#allocation5 + $0x4e0] sm:$0xff]
    %v2070 = vld [vmem:[#allocation5 + $0x4e8] sm:$0xff]
    %v2071 = vld [vmem:[#allocation5 + $0x4f0] sm:$0xff]
    %v2072 = vld [vmem:[#allocation5 + $0x4f8] sm:$0xff]
    %v2073 = vld [vmem:[#allocation5 + $0x500] sm:$0xff]
    %v2074 = vld [vmem:[#allocation5 + $0x508] sm:$0xff]
    %v2075 = vld [vmem:[#allocation5 + $0x510] sm:$0xff]
    %v2076 = vld [vmem:[#allocation5 + $0x518] sm:$0xff]
    %v2077 = vld [vmem:[#allocation5 + $0x520] sm:$0xff]
    %v2078 = vld [vmem:[#allocation5 + $0x528] sm:$0xff]
    %v2079 = vld [vmem:[#allocation5 + $0x530] sm:$0xff]
    %v2080 = vld [vmem:[#allocation5 + $0x538] sm:$0xff]
    %v2081 = vld [vmem:[#allocation5 + $0x540] sm:$0xff]
    %v2082 = vld [vmem:[#allocation5 + $0x548] sm:$0xff]
    %v2083 = vld [vmem:[#allocation5 + $0x550] sm:$0xff]
    %v2084 = vld [vmem:[#allocation5 + $0x558] sm:$0xff]
    %v2085 = vld [vmem:[#allocation5 + $0x560] sm:$0xff]
    %v2086 = vld [vmem:[#allocation5 + $0x568] sm:$0xff]
    %v2087 = vld [vmem:[#allocation5 + $0x570] sm:$0xff]
    %v2088 = vld [vmem:[#allocation5 + $0x578] sm:$0xff]
    %v2089 = vld [vmem:[#allocation5 + $0x580] sm:$0xff]
    %v2090 = vld [vmem:[#allocation5 + $0x588] sm:$0xff]
    %v2091 = vld [vmem:[#allocation5 + $0x590] sm:$0xff]
    %v2092 = vld [vmem:[#allocation5 + $0x598] sm:$0xff]
    %v2093 = vld [vmem:[#allocation5 + $0x5a0] sm:$0xff]
    %v2094 = vld [vmem:[#allocation5 + $0x5a8] sm:$0xff]
    %v2095 = vld [vmem:[#allocation5 + $0x5b0] sm:$0xff]
    %v2096 = vld [vmem:[#allocation5 + $0x5b8] sm:$0xff]
    %v2097 = vld [vmem:[#allocation5 + $0x5c0] sm:$0xff]
    %v2098 = vld [vmem:[#allocation5 + $0x5c8] sm:$0xff]
    %v2099 = vld [vmem:[#allocation5 + $0x5d0] sm:$0xff]
    %v2100 = vld [vmem:[#allocation5 + $0x5d8] sm:$0xff]
    %v2101 = vld [vmem:[#allocation5 + $0x5e0] sm:$0xff]
    %v2102 = vld [vmem:[#allocation5 + $0x5e8] sm:$0xff]
    %v2103 = vld [vmem:[#allocation5 + $0x5f0] sm:$0xff]
    %v2104 = vld [vmem:[#allocation5 + $0x5f8] sm:$0xff]
    %v2105 = vld [vmem:[#allocation5 + $0x600] sm:$0xff]
    %v2106 = vld [vmem:[#allocation5 + $0x608] sm:$0xff]
    %v2107 = vld [vmem:[#allocation5 + $0x610] sm:$0xff]
    %v2108 = vld [vmem:[#allocation5 + $0x618] sm:$0xff]
    %v2109 = vld [vmem:[#allocation5 + $0x620] sm:$0xff]
    %v2110 = vld [vmem:[#allocation5 + $0x628] sm:$0xff]
    %v2111 = vld [vmem:[#allocation5 + $0x630] sm:$0xff]
    %v2112 = vld [vmem:[#allocation5 + $0x638] sm:$0xff]
    %v2113 = vld [vmem:[#allocation5 + $0x640] sm:$0xff]
    %v2114 = vld [vmem:[#allocation5 + $0x648] sm:$0xff]
    %v2115 = vld [vmem:[#allocation5 + $0x650] sm:$0xff]
    %v2116 = vld [vmem:[#allocation5 + $0x658] sm:$0xff]
    %v2117 = vld [vmem:[#allocation5 + $0x660] sm:$0xff]
    %v2118 = vld [vmem:[#allocation5 + $0x668] sm:$0xff]
    %v2119 = vld [vmem:[#allocation5 + $0x670] sm:$0xff]
    %v2120 = vld [vmem:[#allocation5 + $0x678] sm:$0xff]
    %v2121 = vld [vmem:[#allocation5 + $0x680] sm:$0xff]
    %v2122 = vld [vmem:[#allocation5 + $0x688] sm:$0xff]
    %v2123 = vld [vmem:[#allocation5 + $0x690] sm:$0xff]
    %v2124 = vld [vmem:[#allocation5 + $0x698] sm:$0xff]
    %v2125 = vld [vmem:[#allocation5 + $0x6a0] sm:$0xff]
    %v2126 = vld [vmem:[#allocation5 + $0x6a8] sm:$0xff]
    %v2127 = vld [vmem:[#allocation5 + $0x6b0] sm:$0xff]
    %v2128 = vld [vmem:[#allocation5 + $0x6b8] sm:$0xff]
    %v2129 = vld [vmem:[#allocation5 + $0x6c0] sm:$0xff]
    %v2130 = vld [vmem:[#allocation5 + $0x6c8] sm:$0xff]
    %v2131 = vld [vmem:[#allocation5 + $0x6d0] sm:$0xff]
    %v2132 = vld [vmem:[#allocation5 + $0x6d8] sm:$0xff]
    %v2133 = vld [vmem:[#allocation5 + $0x6e0] sm:$0xff]
    %v2134 = vld [vmem:[#allocation5 + $0x6e8] sm:$0xff]
    %v2135 = vld [vmem:[#allocation5 + $0x6f0] sm:$0xff]
    %v2136 = vld [vmem:[#allocation5 + $0x6f8] sm:$0xff]
    %v2137 = vld [vmem:[#allocation5 + $0x700] sm:$0xff]
    %v2138 = vld [vmem:[#allocation5 + $0x708] sm:$0xff]
    %v2139 = vld [vmem:[#allocation5 + $0x710] sm:$0xff]
    %v2140 = vld [vmem:[#allocation5 + $0x718] sm:$0xff]
    %v2141 = vld [vmem:[#allocation5 + $0x720] sm:$0xff]
    %v2142 = vld [vmem:[#allocation5 + $0x728] sm:$0xff]
    %v2143 = vld [vmem:[#allocation5 + $0x730] sm:$0xff]
    %v2144 = vld [vmem:[#allocation5 + $0x738] sm:$0xff]
    %v2145 = vld [vmem:[#allocation5 + $0x740] sm:$0xff]
    %v2146 = vld [vmem:[#allocation5 + $0x748] sm:$0xff]
    %v2147 = vld [vmem:[#allocation5 + $0x750] sm:$0xff]
    %v2148 = vld [vmem:[#allocation5 + $0x758] sm:$0xff]
    %v2149 = vld [vmem:[#allocation5 + $0x760] sm:$0xff]
    %v2150 = vld [vmem:[#allocation5 + $0x768] sm:$0xff]
    %v2151 = vld [vmem:[#allocation5 + $0x770] sm:$0xff]
    %v2152 = vld [vmem:[#allocation5 + $0x778] sm:$0xff]
    %v2153 = vld [vmem:[#allocation5 + $0x780] sm:$0xff]
    %v2154 = vld [vmem:[#allocation5 + $0x788] sm:$0xff]
    %v2155 = vld [vmem:[#allocation5 + $0x790] sm:$0xff]
    %v2156 = vld [vmem:[#allocation5 + $0x798] sm:$0xff]
    %v2157 = vld [vmem:[#allocation5 + $0x7a0] sm:$0xff]
    %v2158 = vld [vmem:[#allocation5 + $0x7a8] sm:$0xff]
    %v2159 = vld [vmem:[#allocation5 + $0x7b0] sm:$0xff]
    %v2160 = vld [vmem:[#allocation5 + $0x7b8] sm:$0xff]
    %v2161 = vld [vmem:[#allocation5 + $0x7c0] sm:$0xff]
    %v2162 = vld [vmem:[#allocation5 + $0x7c8] sm:$0xff]
    %v2163 = vld [vmem:[#allocation5 + $0x7d0] sm:$0xff]
    %v2164 = vld [vmem:[#allocation5 + $0x7d8] sm:$0xff]
    %v2165 = vld [vmem:[#allocation5 + $0x7e0] sm:$0xff]
    %v2166 = vld [vmem:[#allocation5 + $0x7e8] sm:$0xff]
    %v2167 = vld [vmem:[#allocation5 + $0x7f0] sm:$0xff]
    %v2168 = vld [vmem:[#allocation5 + $0x7f8] sm:$0xff]
    %v2169 = vld [vmem:[%s8] sm:$0xf]
    %v2171 = vlaneseq
    %v2172 = vshrl.u32 %v2171, 7
    %v2173 = vsub.s32 0, %v2172
    %v2174 = vrot.slane %v2169, %v2173
    %v2175 = vlaneseq
    %v2176 = vshrl.u32 %v2175, 7
    %v2177 = vsub.s32 1, %v2176
    %v2178 = vrot.slane %v2169, %v2177
    %v2179 = vlaneseq
    %v2180 = vshrl.u32 %v2179, 7
    %v2181 = vsub.s32 2, %v2180
    %v2182 = vrot.slane %v2169, %v2181
    %v2183 = vlaneseq
    %v2184 = vshrl.u32 %v2183, 7
    %v2185 = vsub.s32 3, %v2184
    %v2186 = vrot.slane %v2169, %v2185
    %2191 = vmatprep.subr.mxu0 %v1914
    %2192 = vmatpush1.msra.mxu0 %v1913
    %2193 = vmatprep.subr.mxu0 %v1918
    %2194 = vmatpush1.msra.mxu0 %v1917
    %2195 = vmatprep.subr.mxu0 %v1922
    %2196 = vmatpush1.msra.mxu0 %v1921
    %2197 = vmatprep.subr.mxu0 %v1926
    %2198 = vmatpush1.msra.mxu0 %v1925
    %2199 = vmatprep.subr.mxu0 %v1930
    %2200 = vmatpush1.msra.mxu0 %v1929
    %2201 = vmatprep.subr.mxu0 %v1934
    %2202 = vmatpush1.msra.mxu0 %v1933
    %2203 = vmatprep.subr.mxu0 %v1938
    %2204 = vmatpush1.msra.mxu0 %v1937
    %2205 = vmatprep.subr.mxu0 %v1942
    %2206 = vmatpush1.msra.mxu0 %v1941
    %2207 = vmatprep.subr.mxu0 %v1946
    %2208 = vmatpush1.msra.mxu0 %v1945
    %2209 = vmatprep.subr.mxu0 %v1950
    %2210 = vmatpush1.msra.mxu0 %v1949
    %2211 = vmatprep.subr.mxu0 %v1954
    %2212 = vmatpush1.msra.mxu0 %v1953
    %2213 = vmatprep.subr.mxu0 %v1958
    %2214 = vmatpush1.msra.mxu0 %v1957
    %2215 = vmatprep.subr.mxu0 %v1962
    %2216 = vmatpush1.msra.mxu0 %v1961
    %2217 = vmatprep.subr.mxu0 %v1966
    %2218 = vmatpush1.msra.mxu0 %v1965
    %2219 = vmatprep.subr.mxu0 %v1970
    %2220 = vmatpush1.msra.mxu0 %v1969
    %2221 = vmatprep.subr.mxu0 %v1974
    %2222 = vmatpush1.msra.mxu0 %v1973
    %2223 = vmatprep.subr.mxu0 %v1978
    %2224 = vmatpush1.msra.mxu0 %v1977
    %2225 = vmatprep.subr.mxu0 %v1982
    %2226 = vmatpush1.msra.mxu0 %v1981
    %2227 = vmatprep.subr.mxu0 %v1986
    %2228 = vmatpush1.msra.mxu0 %v1985
    %2229 = vmatprep.subr.mxu0 %v1990
    %2230 = vmatpush1.msra.mxu0 %v1989
    %2231 = vmatprep.subr.mxu0 %v1994
    %2232 = vmatpush1.msra.mxu0 %v1993
    %2233 = vmatprep.subr.mxu0 %v1998
    %2234 = vmatpush1.msra.mxu0 %v1997
    %2235 = vmatprep.subr.mxu0 %v2002
    %2236 = vmatpush1.msra.mxu0 %v2001
    %2237 = vmatprep.subr.mxu0 %v2006
    %2238 = vmatpush1.msra.mxu0 %v2005
    %2239 = vmatprep.subr.mxu0 %v2010
    %2240 = vmatpush1.msra.mxu0 %v2009
    %2241 = vmatprep.subr.mxu0 %v2014
    %2242 = vmatpush1.msra.mxu0 %v2013
    %2243 = vmatprep.subr.mxu0 %v2018
    %2244 = vmatpush1.msra.mxu0 %v2017
    %2245 = vmatprep.subr.mxu0 %v2022
    %2246 = vmatpush1.msra.mxu0 %v2021
    %2247 = vmatprep.subr.mxu0 %v2026
    %2248 = vmatpush1.msra.mxu0 %v2025
    %2249 = vmatprep.subr.mxu0 %v2030
    %2250 = vmatpush1.msra.mxu0 %v2029
    %2251 = vmatprep.subr.mxu0 %v2034
    %2252 = vmatpush1.msra.mxu0 %v2033
    %2253 = vmatprep.subr.mxu0 %v2038
    %2254 = vmatpush1.msra.mxu0 %v2037
    %2255 = vmatprep.mubr.f32.mxu0 %v1910
    %2256 = vmatmul.mubr.f32.gmra.mrb[0].mxu0 %v1909
    %v2257 = vpop.f32.mrb[0].mxu0
    %v2258 = vadd.f32 %v2174, %v2257
    %v2259 = vpop.f32.mrb[0].mxu0
    %v2260 = vadd.f32 %v2178, %v2259
    %2261 = vdwg.mxu0
    %2262 = vmatprep.subr.mxu0 %v2042
    %2263 = vmatpush1.msra.mxu0 %v2041
    %2264 = vmatprep.subr.mxu0 %v2046
    %2265 = vmatpush1.msra.mxu0 %v2045
    %2266 = vmatprep.subr.mxu0 %v2050
    %2267 = vmatpush1.msra.mxu0 %v2049
    %2268 = vmatprep.subr.mxu0 %v2054
    %2269 = vmatpush1.msra.mxu0 %v2053
    %2270 = vmatprep.subr.mxu0 %v2058
    %2271 = vmatpush1.msra.mxu0 %v2057
    %2272 = vmatprep.subr.mxu0 %v2062
    %2273 = vmatpush1.msra.mxu0 %v2061
    %2274 = vmatprep.subr.mxu0 %v2066
    %2275 = vmatpush1.msra.mxu0 %v2065
    %2276 = vmatprep.subr.mxu0 %v2070
    %2277 = vmatpush1.msra.mxu0 %v2069
    %2278 = vmatprep.subr.mxu0 %v2074
    %2279 = vmatpush1.msra.mxu0 %v2073
    %2280 = vmatprep.subr.mxu0 %v2078
    %2281 = vmatpush1.msra.mxu0 %v2077
    %2282 = vmatprep.subr.mxu0 %v2082
    %2283 = vmatpush1.msra.mxu0 %v2081
    %2284 = vmatprep.subr.mxu0 %v2086
    %2285 = vmatpush1.msra.mxu0 %v2085
    %2286 = vmatprep.subr.mxu0 %v2090
    %2287 = vmatpush1.msra.mxu0 %v2089
    %2288 = vmatprep.subr.mxu0 %v2094
    %2289 = vmatpush1.msra.mxu0 %v2093
    %2290 = vmatprep.subr.mxu0 %v2098
    %2291 = vmatpush1.msra.mxu0 %v2097
    %2292 = vmatprep.subr.mxu0 %v2102
    %2293 = vmatpush1.msra.mxu0 %v2101
    %2294 = vmatprep.subr.mxu0 %v2106
    %2295 = vmatpush1.msra.mxu0 %v2105
    %2296 = vmatprep.subr.mxu0 %v2110
    %2297 = vmatpush1.msra.mxu0 %v2109
    %2298 = vmatprep.subr.mxu0 %v2114
    %2299 = vmatpush1.msra.mxu0 %v2113
    %2300 = vmatprep.subr.mxu0 %v2118
    %2301 = vmatpush1.msra.mxu0 %v2117
    %2302 = vmatprep.subr.mxu0 %v2122
    %2303 = vmatpush1.msra.mxu0 %v2121
    %2304 = vmatprep.subr.mxu0 %v2126
    %2305 = vmatpush1.msra.mxu0 %v2125
    %2306 = vmatprep.subr.mxu0 %v2130
    %2307 = vmatpush1.msra.mxu0 %v2129
    %2308 = vmatprep.subr.mxu0 %v2134
    %2309 = vmatpush1.msra.mxu0 %v2133
    %2310 = vmatprep.subr.mxu0 %v2138
    %2311 = vmatpush1.msra.mxu0 %v2137
    %2312 = vmatprep.subr.mxu0 %v2142
    %2313 = vmatpush1.msra.mxu0 %v2141
    %2314 = vmatprep.subr.mxu0 %v2146
    %2315 = vmatpush1.msra.mxu0 %v2145
    %2316 = vmatprep.subr.mxu0 %v2150
    %2317 = vmatpush1.msra.mxu0 %v2149
    %2318 = vmatprep.subr.mxu0 %v2154
    %2319 = vmatpush1.msra.mxu0 %v2153
    %2320 = vmatprep.subr.mxu0 %v2158
    %2321 = vmatpush1.msra.mxu0 %v2157
    %2322 = vmatprep.subr.mxu0 %v2162
    %2323 = vmatpush1.msra.mxu0 %v2161
    %2324 = vmatprep.subr.mxu0 %v2166
    %2325 = vmatpush1.msra.mxu0 %v2165
    %2326 = vmatprep.mubr.f32.mxu0 %v1912
    %2327 = vmatmul.mubr.f32.gmra.mrb[0].mxu0 %v1911
    %v2328 = vpop.f32.mrb[0].mxu0
    %v2329 = vadd.f32 %v2258, %v2328
    %v2330 = vpop.f32.mrb[0].mxu0
    %v2331 = vadd.f32 %v2260, %v2330
    %2332 = vdwg.mxu0
    %2333 = vmatprep.subr.mxu0 %v1916
    %2334 = vmatpush1.msra.mxu0 %v1915
    %2335 = vmatprep.subr.mxu0 %v1920
    %2336 = vmatpush1.msra.mxu0 %v1919
    %2337 = vmatprep.subr.mxu0 %v1924
    %2338 = vmatpush1.msra.mxu0 %v1923
    %2339 = vmatprep.subr.mxu0 %v1928
    %2340 = vmatpush1.msra.mxu0 %v1927
    %2341 = vmatprep.subr.mxu0 %v1932
    %2342 = vmatpush1.msra.mxu0 %v1931
    %2343 = vmatprep.subr.mxu0 %v1936
    %2344 = vmatpush1.msra.mxu0 %v1935
    %2345 = vmatprep.subr.mxu0 %v1940
    %2346 = vmatpush1.msra.mxu0 %v1939
    %2347 = vmatprep.subr.mxu0 %v1944
    %2348 = vmatpush1.msra.mxu0 %v1943
    %2349 = vmatprep.subr.mxu0 %v1948
    %2350 = vmatpush1.msra.mxu0 %v1947
    %2351 = vmatprep.subr.mxu0 %v1952
    %2352 = vmatpush1.msra.mxu0 %v1951
    %2353 = vmatprep.subr.mxu0 %v1956
    %2354 = vmatpush1.msra.mxu0 %v1955
    %2355 = vmatprep.subr.mxu0 %v1960
    %2356 = vmatpush1.msra.mxu0 %v1959
    %2357 = vmatprep.subr.mxu0 %v1964
    %2358 = vmatpush1.msra.mxu0 %v1963
    %2359 = vmatprep.subr.mxu0 %v1968
    %2360 = vmatpush1.msra.mxu0 %v1967
    %2361 = vmatprep.subr.mxu0 %v1972
    %2362 = vmatpush1.msra.mxu0 %v1971
    %2363 = vmatprep.subr.mxu0 %v1976
    %2364 = vmatpush1.msra.mxu0 %v1975
    %2365 = vmatprep.subr.mxu0 %v1980
    %2366 = vmatpush1.msra.mxu0 %v1979
    %2367 = vmatprep.subr.mxu0 %v1984
    %2368 = vmatpush1.msra.mxu0 %v1983
    %2369 = vmatprep.subr.mxu0 %v1988
    %2370 = vmatpush1.msra.mxu0 %v1987
    %2371 = vmatprep.subr.mxu0 %v1992
    %2372 = vmatpush1.msra.mxu0 %v1991
    %2373 = vmatprep.subr.mxu0 %v1996
    %2374 = vmatpush1.msra.mxu0 %v1995
    %2375 = vmatprep.subr.mxu0 %v2000
    %2376 = vmatpush1.msra.mxu0 %v1999
    %2377 = vmatprep.subr.mxu0 %v2004
    %2378 = vmatpush1.msra.mxu0 %v2003
    %2379 = vmatprep.subr.mxu0 %v2008
    %2380 = vmatpush1.msra.mxu0 %v2007
    %2381 = vmatprep.subr.mxu0 %v2012
    %2382 = vmatpush1.msra.mxu0 %v2011
    %2383 = vmatprep.subr.mxu0 %v2016
    %2384 = vmatpush1.msra.mxu0 %v2015
    %2385 = vmatprep.subr.mxu0 %v2020
    %2386 = vmatpush1.msra.mxu0 %v2019
    %2387 = vmatprep.subr.mxu0 %v2024
    %2388 = vmatpush1.msra.mxu0 %v2023
    %2389 = vmatprep.subr.mxu0 %v2028
    %2390 = vmatpush1.msra.mxu0 %v2027
    %2391 = vmatprep.subr.mxu0 %v2032
    %2392 = vmatpush1.msra.mxu0 %v2031
    %2393 = vmatprep.subr.mxu0 %v2036
    %2394 = vmatpush1.msra.mxu0 %v2035
    %2395 = vmatprep.subr.mxu0 %v2040
    %2396 = vmatpush1.msra.mxu0 %v2039
    %2397 = vmatprep.mubr.f32.mxu0 %v1910
    %2398 = vmatmul.mubr.f32.gmra.mrb[0].mxu0 %v1909
    %v2399 = vpop.f32.mrb[0].mxu0
    %v2400 = vadd.f32 %v2182, %v2399
    %v2401 = vpop.f32.mrb[0].mxu0
    %v2402 = vadd.f32 %v2186, %v2401
    %2403 = vdwg.mxu0
    %2404 = vmatprep.subr.mxu0 %v2044
    %2405 = vmatpush1.msra.mxu0 %v2043
    %2406 = vmatprep.subr.mxu0 %v2048
    %2407 = vmatpush1.msra.mxu0 %v2047
    %2408 = vmatprep.subr.mxu0 %v2052
    %2409 = vmatpush1.msra.mxu0 %v2051
    %2410 = vmatprep.subr.mxu0 %v2056
    %2411 = vmatpush1.msra.mxu0 %v2055
    %2412 = vmatprep.subr.mxu0 %v2060
    %2413 = vmatpush1.msra.mxu0 %v2059
    %2414 = vmatprep.subr.mxu0 %v2064
    %2415 = vmatpush1.msra.mxu0 %v2063
    %2416 = vmatprep.subr.mxu0 %v2068
    %2417 = vmatpush1.msra.mxu0 %v2067
    %2418 = vmatprep.subr.mxu0 %v2072
    %2419 = vmatpush1.msra.mxu0 %v2071
    %2420 = vmatprep.subr.mxu0 %v2076
    %2421 = vmatpush1.msra.mxu0 %v2075
    %2422 = vmatprep.subr.mxu0 %v2080
    %2423 = vmatpush1.msra.mxu0 %v2079
    %2424 = vmatprep.subr.mxu0 %v2084
    %2425 = vmatpush1.msra.mxu0 %v2083
    %2426 = vmatprep.subr.mxu0 %v2088
    %2427 = vmatpush1.msra.mxu0 %v2087
    %2428 = vmatprep.subr.mxu0 %v2092
    %2429 = vmatpush1.msra.mxu0 %v2091
    %2430 = vmatprep.subr.mxu0 %v2096
    %2431 = vmatpush1.msra.mxu0 %v2095
    %2432 = vmatprep.subr.mxu0 %v2100
    %2433 = vmatpush1.msra.mxu0 %v2099
    %2434 = vmatprep.subr.mxu0 %v2104
    %2435 = vmatpush1.msra.mxu0 %v2103
    %2436 = vmatprep.subr.mxu0 %v2108
    %2437 = vmatpush1.msra.mxu0 %v2107
    %2438 = vmatprep.subr.mxu0 %v2112
    %2439 = vmatpush1.msra.mxu0 %v2111
    %2440 = vmatprep.subr.mxu0 %v2116
    %2441 = vmatpush1.msra.mxu0 %v2115
    %2442 = vmatprep.subr.mxu0 %v2120
    %2443 = vmatpush1.msra.mxu0 %v2119
    %2444 = vmatprep.subr.mxu0 %v2124
    %2445 = vmatpush1.msra.mxu0 %v2123
    %2446 = vmatprep.subr.mxu0 %v2128
    %2447 = vmatpush1.msra.mxu0 %v2127
    %2448 = vmatprep.subr.mxu0 %v2132
    %2449 = vmatpush1.msra.mxu0 %v2131
    %2450 = vmatprep.subr.mxu0 %v2136
    %2451 = vmatpush1.msra.mxu0 %v2135
    %2452 = vmatprep.subr.mxu0 %v2140
    %2453 = vmatpush1.msra.mxu0 %v2139
    %2454 = vmatprep.subr.mxu0 %v2144
    %2455 = vmatpush1.msra.mxu0 %v2143
    %2456 = vmatprep.subr.mxu0 %v2148
    %2457 = vmatpush1.msra.mxu0 %v2147
    %2458 = vmatprep.subr.mxu0 %v2152
    %2459 = vmatpush1.msra.mxu0 %v2151
    %2460 = vmatprep.subr.mxu0 %v2156
    %2461 = vmatpush1.msra.mxu0 %v2155
    %2462 = vmatprep.subr.mxu0 %v2160
    %2463 = vmatpush1.msra.mxu0 %v2159
    %2464 = vmatprep.subr.mxu0 %v2164
    %2465 = vmatpush1.msra.mxu0 %v2163
    %2466 = vmatprep.subr.mxu0 %v2168
    %2467 = vmatpush1.msra.mxu0 %v2167
    %2468 = vmatprep.mubr.f32.mxu0 %v1912
    %2469 = vmatmul.mubr.f32.gmra.mrb[0].mxu0 %v1911
    %v2470 = vpop.f32.mrb[0].mxu0
    %v2471 = vadd.f32 %v2400, %v2470
    %v2472 = vpop.f32.mrb[0].mxu0
    %v2473 = vadd.f32 %v2402, %v2472
    %2474 = vdwg.mxu0
    %v2475 = vmax.f32 %v2329, 0.0
    %v2476 = vmax.f32 %v2331, 0.0
    %v2477 = vmax.f32 %v2471, 0.0
    %v2478 = vmax.f32 %v2473, 0.0
    %v2479 = vmul.f32 %v2475, %v2475
    %v2480 = vmul.f32 %v2476, %v2476
    %v2481 = vmul.f32 %v2477, %v2477
    %v2482 = vmul.f32 %v2478, %v2478
    %v2483 = vsel %vm140, %v2479, 0.0
    %v2484 = vsel %vm140, %v2480, 0.0
    %v2485 = vadd.f32 %v2483, %v2484
    %v2486 = vsel %vm140, %v2481, 0.0
    %v2487 = vadd.f32 %v2485, %v2486
    %v2488 = vsel %vm140, %v2482, 0.0
    %v2489 = vadd.f32 %v2487, %v2488
    %2490 = vadd.xlane.f32.xlu0 %v2489
    %v2491 = vpop.xlane.xlu0 %2490
    %v2492 = vmax.f32 %v2491, 1e-24
    %v2493 = vrsqrt.pop %v2492
    %v2494 = vmul.f32 %v2475, %v2493
    %v2495 = vmul.f32 %v2476, %v2493
    %v2496 = vmul.f32 %v2477, %v2493
    %v2497 = vmul.f32 %v2478, %v2493
    %2498 = vst [vmem:[#allocation7] sm:$0x3f] %v2494
    %2499 = vst [vmem:[#allocation7 + $0x8] sm:$0x3f] %v2495
    %2500 = vst [vmem:[#allocation7 + $0x10] sm:$0x3f] %v2496
    %2501 = vst [vmem:[#allocation7 + $0x18] sm:$0x3f] %v2497
    // Predicated region
    $region46: #{tpu_custom_call.1} parent=1 // pred_check
      _
    $region47: #{tpu_custom_call.1} parent=1 // pred_check_branch
      %2503 = sbr.rel (0) target = $region49
    $region48: #{tpu_custom_call.1} parent=1 // pred_region
      %s2505 = ssub.s32 512, 512
      %2506 = vsyncadd [#allocation4], %s2505
      %s2508 = sshll.u32 [#allocation7], 4
      %s2509 = int_to_ptr.vmem [resolvable:$true] %s2508
      %2511 = dma.vmem_to_hbm [thread:$0]  %s2509, 512, %s9, [#allocation4]
    $region49: #{tpu_custom_call.1} parent=1 // pred_fallthru
      _
    // Predicated region
    $region50: #{tpu_custom_call.1} parent=1 // pred_check
      _
    $region51: #{tpu_custom_call.1} parent=1 // pred_check_branch
      %2513 = sbr.rel (0) target = $region53
    $region52: #{tpu_custom_call.1} parent=1 // pred_region
      %2514 = dma.done [#allocation4], 512
    $region53: #{tpu_custom_call.1} parent=1 // pred_fallthru
      _
    %2515 = vsyncpa [#allocation3], 1
    %2516 = vsyncpa [#allocation6], 1
    %2517 = vsyncpa [#allocation4], 1

</llo_original>
